<compile_context>
chip_gen: v5e
topology: v5e:2x2
jax: 0.10.0
libtpu: 0.0.40
codegen_flags: <defaults>
</compile_context>

<pallas_src>
import functools

import jax
import jax.numpy as jnp
from jax.experimental import pallas as pl
from jax.experimental.pallas import tpu as pltpu


# ---------------------------------------------------------------------------
# In-kernel helpers
# ---------------------------------------------------------------------------

def _fuse_vec_s0(taps_ref, fmask_ref, wfs0_ref, wfmap_ref,
                 wmap, mscale, mshift, fscale, fshift, howo, howo_pad):
    """Dropout2d(identity) + Conv2d(k=3, s=2, pad=0) + BN + ReLU + avgpool.

    The 3x3/s2 conv runs as 9 accumulated 2-D MXU matmul taps.  The
    channel_mapping (1x1 conv + BN + ReLU) is re-applied per tap slice, so the
    full-resolution s0_map_mapping never exists in HBM (or VMEM); the extra
    MXU work is ~1.25x of one mapping matmul, the HBM saving ~8x.
    """
    n = taps_ref.shape[1]                       # B * HoWo_pad
    cout = wmap.shape[1]
    b = n // howo_pad
    acc = jnp.zeros((n, cout), jnp.float32)
    for t in range(9):
        x_t = taps_ref[t]                                           # (n, Cin) bf16
        m_t = jnp.dot(x_t, wmap, preferred_element_type=jnp.float32)
        m_t = jnp.maximum(m_t * mscale + mshift, 0.0)               # mapping on tap slice
        acc = acc + jnp.dot(x_t, wfs0_ref[t],
                            preferred_element_type=jnp.float32)
        acc = acc + jnp.dot(m_t.astype(jnp.bfloat16), wfmap_ref[t],
                            preferred_element_type=jnp.float32)
    y = jnp.maximum(acc * fscale + fshift, 0.0)                     # BN(eval)+ReLU, f32
    y = y * fmask_ref[...]                                          # zero padded rows
    y3 = y.reshape(b, howo_pad, cout)                               # howo_pad % 8 == 0
    return jnp.sum(y3, axis=1) * (1.0 / howo)                       # (B, Cout) f32


# ---------------------------------------------------------------------------
# Pallas kernels
# ---------------------------------------------------------------------------

def _facial_train_kernel(s1_ref, t_ref, tvec_ref, taps_ref, fmask_ref,
                         wmap_ref, mscale_ref, mshift_ref,
                         wfs0_ref, wfmap_ref, fscale_ref, fshift_ref,
                         heads_ref, wmean_ref,
                         cam_ref, ls1_ref, ltv_ref, ls0_ref,
                         s1rel_ref, trel_ref, *, howo, howo_pad):
    b, hw, cout = t_ref.shape
    wmap = wmap_ref[...]
    mscale = mscale_ref[...]
    mshift = mshift_ref[...]

    # --- s1 channel mapping: ONE 2-D MXU matmul (M = B*HW), folded BN + ReLU
    y = jnp.dot(s1_ref[...], wmap, preferred_element_type=jnp.float32)
    y = jnp.maximum(y * mscale + mshift, 0.0)             # (B*HW, Cout) f32
    y3 = y.reshape(b, hw, cout)                           # tile-aligned (HW % 8 == 0)

    # --- both CAMs in one pass: VPU multiply + lane reduce, lane-dense [2B, HW]
    cam_in = jnp.concatenate([y3, t_ref[...].astype(jnp.float32)], axis=0)
    cam_ref[...] = jnp.sum(cam_in * wmean_ref[...], axis=2)

    # --- AdaptiveAvgPool2d((1,1)) on the s1 branch
    vec_s1 = jnp.mean(y3, axis=1)                         # (B, Cout) f32

    # --- fused s0 branch: mapping + 3x3/s2 conv taps + BN + ReLU + avgpool
    vec_s0 = _fuse_vec_s0(taps_ref, fmask_ref, wfs0_ref, wfmap_ref,
                          wmap, mscale, mshift,
                          fscale_ref[...], fshift_ref[...], howo, howo_pad)

    # --- classifier heads: shared, zero-padded 128-lane weight matrix
    heads = heads_ref[...]
    tvec = tvec_ref[...]
    ls1_ref[...] = jnp.dot(vec_s1.astype(jnp.bfloat16), heads,
                           preferred_element_type=jnp.float32)
    ltv_ref[...] = jnp.dot(tvec.astype(jnp.bfloat16), heads,
                           preferred_element_type=jnp.float32)
    ls0_ref[...] = jnp.dot(vec_s0.astype(jnp.bfloat16), heads,
                           preferred_element_type=jnp.float32)

    # --- relation matrices + F.normalize(p=2, dim=1) via rsqrt (EUP)
    def _rel(v):
        vb = v.astype(jnp.bfloat16)               # explicit bf16, f32 accumulation
        r = jax.lax.dot_general(vb, vb, (((1,), (1,)), ((), ())),
                                preferred_element_type=jnp.float32)
        ss = jnp.sum(r * r, axis=1, keepdims=True)
        return r * jax.lax.rsqrt(jnp.maximum(ss, 1e-24))

    s1rel_ref[...] = _rel(vec_s1)
    trel_ref[...] = _rel(tvec)


def _facial_val_kernel(taps_ref, fmask_ref, wmap_ref, mscale_ref, mshift_ref,
                       wfs0_ref, wfmap_ref, fscale_ref, fshift_ref, heads_ref,
                       vec_ref, logits_ref, *, howo, howo_pad):
    vec = _fuse_vec_s0(taps_ref, fmask_ref, wfs0_ref, wfmap_ref,
                       wmap_ref[...], mscale_ref[...], mshift_ref[...],
                       fscale_ref[...], fshift_ref[...], howo, howo_pad)
    vec_ref[...] = vec
    logits_ref[...] = jnp.dot(vec.astype(jnp.bfloat16), heads_ref[...],
                              preferred_element_type=jnp.float32)


# ---------------------------------------------------------------------------
# pallas_call wrapper (single invocation; every operand a whole VMEM block)
# ---------------------------------------------------------------------------

def _whole_call(kernel, out_shape, *args):
    if isinstance(out_shape, (tuple, list)):
        out_specs = tuple(pl.BlockSpec(memory_space=pltpu.MemorySpace.VMEM)
                          for _ in out_shape)
    else:
        out_specs = pl.BlockSpec(memory_space=pltpu.MemorySpace.VMEM)
    return pl.pallas_call(
        kernel,
        out_shape=out_shape,
        in_specs=[pl.BlockSpec(memory_space=pltpu.MemorySpace.VMEM)
                  for _ in args],
        out_specs=out_specs,
        # Safe everywhere (v5e/v6e/v7x); raise toward 64-100 MiB on v6e once
        # the kernels are gridded for realistic feature-map sizes.
        compiler_params=pltpu.CompilerParams(
            vmem_limit_bytes=32 * 1024 * 1024),
    )(*args)


# ---------------------------------------------------------------------------
# JAX-side glue (cheap layout plumbing only; no duplicated feature maps)
# ---------------------------------------------------------------------------

def _nchw_to_rows(x):
    b, c, h, w = x.shape
    return jnp.transpose(x, (0, 2, 3, 1)).reshape(b * h * w, c)


def _nchw_to_b_hw_c(x):
    b, c, h, w = x.shape
    return jnp.transpose(x, (0, 2, 3, 1)).reshape(b, h * w, c)


def _fuse_taps(x_nchw, howo_pad):
    """9 stride-2 tap slices of s0_map + pool mask (rows padded to mult. of 8)."""
    b, c, h, w = x_nchw.shape
    ho = (h - 3) // 2 + 1
    wo = (w - 3) // 2 + 1
    x = jnp.transpose(x_nchw, (0, 2, 3, 1))                # NHWC
    taps = []
    for dy in range(3):
        for dx in range(3):
            sl = x[:, dy:dy + 2 * ho - 1:2, dx:dx + 2 * wo - 1:2, :]
            taps.append(sl.reshape(b, ho * wo, c))
    t = jnp.stack(taps, axis=0)                             # (9, B, HoWo, C)
    pad = howo_pad - ho * wo
    if pad:
        t = jnp.pad(t, ((0, 0), (0, 0), (0, pad), (0, 0)))
    taps2 = t.reshape(9, b * howo_pad, c).astype(jnp.bfloat16)
    mask = (jnp.arange(howo_pad) < ho * wo).astype(jnp.float32)
    fmask = jnp.broadcast_to(mask[None, :], (b, howo_pad)).reshape(b * howo_pad, 1)
    return taps2, fmask


def facial_forward_train(t_map, t_vector, s0_map, s1_map, p, *, num_classes):
    b, cin, h, w = s0_map.shape
    hw = h * w
    assert hw % 8 == 0, "H*W must be a multiple of 8 (sublane tile)"
    k = num_classes
    kw = p["heads_all"].shape[1]

    ho = (h - 3) // 2 + 1
    wo = (w - 3) // 2 + 1
    howo = ho * wo
    howo_pad = -(-howo // 8) * 8

    # TODO(synk): transposes disappear if the backbone can emit NHWC directly.
    s1_rows = _nchw_to_rows(s1_map).astype(jnp.bfloat16)            # (B*HW, Cin)
    t_3d = jax.lax.stop_gradient(
        _nchw_to_b_hw_c(t_map)).astype(jnp.bfloat16)                # t_map_copy
    taps, fmask = _fuse_taps(s0_map, howo_pad)

    kernel = functools.partial(_facial_train_kernel,
                               howo=howo, howo_pad=howo_pad)
    cam_all, l_s1v, l_tv, l_s0v, s1rel, trel = _whole_call(
        kernel,
        (
            jax.ShapeDtypeStruct((2 * b, hw), jnp.float32),   # [s1 CAM ; t CAM]
            jax.ShapeDtypeStruct((b, kw), jnp.float32),       # s1_vector_last @ heads
            jax.ShapeDtypeStruct((b, kw), jnp.float32),       # t_vector        @ heads
            jax.ShapeDtypeStruct((b, kw), jnp.float32),       # s0_vector_last @ heads
            jax.ShapeDtypeStruct((b, b), jnp.float32),        # s1_relation_norm
            jax.ShapeDtypeStruct((b, b), jnp.float32),        # t_relation_norm
        ),
        s1_rows, t_3d, t_vector, taps, fmask,
        p["wmap"], p["bn_map_scale"], p["bn_map_shift"],
        p["wfuse_s0"], p["wfuse_map"], p["bn_fuse_scale"], p["bn_fuse_shift"],
        p["heads_all"], p["wmean"],
    )

    logit_s1 = l_s1v[:, :k]
    logit_m_ = l_s1v[:, k:2 * k]      # classifier_ts (tied to classifier_t)
    logit_t = l_tv[:, k:2 * k]
    logit_s0_t = l_tv[:, 2 * k:3 * k]
    logit_t_s0 = l_s0v[:, k:2 * k]
    logit_s0 = l_s0v[:, 2 * k:3 * k]

    s1_map_cam = cam_all[:b].reshape(b, h, w)
    t_map_cam = cam_all[b:].reshape(b, h, w)

    logit_m = jax.lax.stop_gradient(logit_t)          # logit_t_t (detached)
    logit_n = jnp.concatenate([logit_t, logit_s0], axis=0)
    logit_n_ = jnp.concatenate([logit_t_s0, logit_s0_t], axis=0)

    return (logit_t, logit_s0, logit_s1, t_map_cam, s1_map_cam,
            trel, s1rel, logit_m, logit_m_, logit_n, logit_n_)


def facial_forward_val(s0_map, p, *, num_classes):
    b, cin, h, w = s0_map.shape
    k = num_classes
    cout = p["wmap"].shape[1]
    kwv = p["heads_val"].shape[1]

    ho = (h - 3) // 2 + 1
    wo = (w - 3) // 2 + 1
    howo = ho * wo
    howo_pad = -(-howo // 8) * 8

    taps, fmask = _fuse_taps(s0_map, howo_pad)
    kernel = functools.partial(_facial_val_kernel,
                               howo=howo, howo_pad=howo_pad)
    vec, logits = _whole_call(
        kernel,
        (jax.ShapeDtypeStruct((b, cout), jnp.float32),
         jax.ShapeDtypeStruct((b, kwv), jnp.float32)),
        taps, fmask,
        p["wmap"], p["bn_map_scale"], p["bn_map_shift"],
        p["wfuse_s0"], p["wfuse_map"], p["bn_fuse_scale"], p["bn_fuse_shift"],
        p["heads_val"],
    )
    return logits[:, :k], vec


# ---------------------------------------------------------------------------
# Deterministic synthetic parameters (shapes follow Facial.__init__, scaled:
# in_channel = out_channel = C, num_classes = K)
# ---------------------------------------------------------------------------

def _bn_fold(gamma, beta, mean, var, eps=1e-5):
    scale = gamma / jnp.sqrt(var + eps)
    shift = beta - mean * scale
    return scale.reshape(1, -1), shift.reshape(1, -1)


def _round_up(x, m):
    return -(-x // m) * m


def init_params(key, c_in, c_out, k):
    ks = jax.random.split(key, 13)
    nrm = jax.random.normal
    # PyTorch-layout master weights (f32)
    w_map = 0.1 * nrm(ks[0], (c_out, c_in, 1, 1), jnp.float32)
    w_fuse = 0.05 * nrm(ks[1], (c_out, c_in + c_out, 3, 3), jnp.float32)
    w_t = 0.1 * nrm(ks[10], (k, c_out), jnp.float32)
    w_s0 = 0.1 * nrm(ks[11], (k, c_out), jnp.float32)
    w_s1 = 0.1 * nrm(ks[12], (k, c_out), jnp.float32)

    map_scale, map_shift = _bn_fold(
        1.0 + 0.1 * nrm(ks[2], (c_out,)), 0.1 * nrm(ks[3], (c_out,)),
        0.1 * nrm(ks[4], (c_out,)), jnp.abs(1.0 + 0.1 * nrm(ks[5], (c_out,))))
    fuse_scale, fuse_shift = _bn_fold(
        1.0 + 0.1 * nrm(ks[6], (c_out,)), 0.1 * nrm(ks[7], (c_out,)),
        0.1 * nrm(ks[8], (c_out,)), jnp.abs(1.0 + 0.1 * nrm(ks[9], (c_out,))))

    # feature_fusion weight in per-tap matmul layout (tap = dy*3 + dx), split
    # into the s0_map channel block and the channel_mapping channel block.
    w_fuse_t = jnp.transpose(w_fuse, (2, 3, 1, 0)).reshape(9, c_in + c_out, c_out)

    # Combined, pre-transposed classifier heads, zero-padded to >=128 lanes:
    # cols [0:K]=classifier_s1, [K:2K]=classifier_t(=_ts), [2K:3K]=classifier_s0.
    kw = _round_up(max(3 * k, 128), 128)
    heads_all = jnp.zeros((c_out, kw), jnp.float32)
    heads_all = heads_all.at[:, 0:k].set(w_s1.T)
    heads_all = heads_all.at[:, k:2 * k].set(w_t.T)
    heads_all = heads_all.at[:, 2 * k:3 * k].set(w_s0.T)
    kwv = _round_up(max(k, 128), 128)
    heads_val = jnp.zeros((c_out, kwv), jnp.float32).at[:, :k].set(w_s0.T)

    return {
        # conv weights in 2-D matmul layout, bf16 for the MXU
        "wmap": w_map[:, :, 0, 0].T.astype(jnp.bfloat16),          # (Cin, Cout)
        "wfuse_s0": w_fuse_t[:, :c_in, :].astype(jnp.bfloat16),    # (9, Cin, Cout)
        "wfuse_map": w_fuse_t[:, c_in:, :].astype(jnp.bfloat16),   # (9, Cout, Cout)
        # folded BatchNorm (eval semantics), kept f32 for the VPU epilogue
        "bn_map_scale": map_scale, "bn_map_shift": map_shift,      # (1, Cout)
        "bn_fuse_scale": fuse_scale, "bn_fuse_shift": fuse_shift,
        "heads_all": heads_all.astype(jnp.bfloat16),               # (Cout, >=128)
        "heads_val": heads_val.astype(jnp.bfloat16),
        # CAM weight: params[-4] == classifier_t.weight (detached), mean over K
        "wmean": jnp.mean(jax.lax.stop_gradient(w_t), axis=0).reshape(1, 1, c_out),
    }


if __name__ == "__main__":
    key = jax.random.PRNGKey(0)
    B, C, K, H, W = 2, 32, 16, 8, 8      # in_channel = out_channel = C
    ks = jax.random.split(key, 5)
    # Backbone outputs (ResNet backbones not defined in model.py -> inputs).
    t_map = jax.random.normal(ks[0], (B, C, H, W), jnp.float32)
    t_vector = jax.random.normal(ks[1], (B, C), jnp.float32)
    s0_map = jax.random.normal(ks[2], (B, C, H, W), jnp.float32)
    s1_map = jax.random.normal(ks[3], (B, C, H, W), jnp.float32)
    params = init_params(ks[4], C, C, K)

    train_fn = jax.jit(facial_forward_train, static_argnames=("num_classes",))
    val_fn = jax.jit(facial_forward_val, static_argnames=("num_classes",))

    train_out = train_fn(t_map, t_vector, s0_map, s1_map, params, num_classes=K)
    val_out = val_fn(s0_map, params, num_classes=K)
    jax.block_until_ready(train_out)
    jax.block_until_ready(val_out)
    print("KERNEL_OK")
</pallas_src>

<mosaic_0001>
module attributes {stable_mosaic.version = 11 : i64} {
  func.func @_facial_train_kernel(%arg0: memref<128x32xbf16, #tpu.memory_space<vmem>>, %arg1: memref<2x64x32xbf16, #tpu.memory_space<vmem>>, %arg2: memref<2x32xf32, #tpu.memory_space<vmem>>, %arg3: memref<9x32x32xbf16, #tpu.memory_space<vmem>>, %arg4: memref<32x1xf32, #tpu.memory_space<vmem>>, %arg5: memref<32x32xbf16, #tpu.memory_space<vmem>>, %arg6: memref<1x32xf32, #tpu.memory_space<vmem>>, %arg7: memref<1x32xf32, #tpu.memory_space<vmem>>, %arg8: memref<9x32x32xbf16, #tpu.memory_space<vmem>>, %arg9: memref<9x32x32xbf16, #tpu.memory_space<vmem>>, %arg10: memref<1x32xf32, #tpu.memory_space<vmem>>, %arg11: memref<1x32xf32, #tpu.memory_space<vmem>>, %arg12: memref<32x128xbf16, #tpu.memory_space<vmem>>, %arg13: memref<1x1x32xf32, #tpu.memory_space<vmem>>, %arg14: memref<4x64xf32, #tpu.memory_space<vmem>>, %arg15: memref<2x128xf32, #tpu.memory_space<vmem>>, %arg16: memref<2x128xf32, #tpu.memory_space<vmem>>, %arg17: memref<2x128xf32, #tpu.memory_space<vmem>>, %arg18: memref<2x2xf32, #tpu.memory_space<vmem>>, %arg19: memref<2x2xf32, #tpu.memory_space<vmem>>) attributes {dimension_semantics = [], scalar_prefetch = 0 : i64, scratch_operands = 0 : i64, tpu.core_type = #tpu.core_type<tc>} {
    %c0 = arith.constant 0 : index
    %c0_0 = arith.constant 0 : index
    %0 = vector.load %arg5[%c0, %c0_0] : memref<32x32xbf16, #tpu.memory_space<vmem>>, vector<32x32xbf16>
    %c0_1 = arith.constant 0 : index
    %c0_2 = arith.constant 0 : index
    %1 = vector.load %arg6[%c0_1, %c0_2] : memref<1x32xf32, #tpu.memory_space<vmem>>, vector<1x32xf32>
    %c0_3 = arith.constant 0 : index
    %c0_4 = arith.constant 0 : index
    %2 = vector.load %arg7[%c0_3, %c0_4] : memref<1x32xf32, #tpu.memory_space<vmem>>, vector<1x32xf32>
    %c0_5 = arith.constant 0 : index
    %c0_6 = arith.constant 0 : index
    %3 = vector.load %arg0[%c0_5, %c0_6] : memref<128x32xbf16, #tpu.memory_space<vmem>>, vector<128x32xbf16>
    %cst = arith.constant dense<0.000000e+00> : vector<128x32xf32>
    %4 = tpu.matmul %3, %0, %cst {dimension_numbers = #tpu.dot_dimension_numbers<[1], [0], [0], [1], [0, 0, 1, 1], [], []>} : vector<128x32xbf16>, vector<32x32xbf16>, vector<128x32xf32> -> vector<128x32xf32>
    %5 = vector.broadcast %1 : vector<1x32xf32> to vector<128x32xf32>
    %6 = arith.mulf %4, %5 : vector<128x32xf32>
    %7 = vector.broadcast %2 : vector<1x32xf32> to vector<128x32xf32>
    %8 = arith.addf %6, %7 : vector<128x32xf32>
    %cst_7 = arith.constant 0.000000e+00 : f32
    %9 = vector.broadcast %cst_7 : f32 to vector<128x32xf32>
    %10 = arith.maximumf %8, %9 : vector<128x32xf32>
    %11 = vector.shape_cast %10 : vector<128x32xf32> to vector<2x64x32xf32>
    %c0_8 = arith.constant 0 : index
    %c0_9 = arith.constant 0 : index
    %c0_10 = arith.constant 0 : index
    %12 = vector.load %arg1[%c0_8, %c0_9, %c0_10] : memref<2x64x32xbf16, #tpu.memory_space<vmem>>, vector<2x64x32xbf16>
    %13 = arith.extf %12 : vector<2x64x32xbf16> to vector<2x64x32xf32>
    %14 = tpu.concatenate %11, %13 in 0 : vector<2x64x32xf32>, vector<2x64x32xf32> -> vector<4x64x32xf32>
    %c0_11 = arith.constant 0 : index
    %c0_12 = arith.constant 0 : index
    %c0_13 = arith.constant 0 : index
    %15 = vector.load %arg13[%c0_11, %c0_12, %c0_13] : memref<1x1x32xf32, #tpu.memory_space<vmem>>, vector<1x1x32xf32>
    %16 = vector.broadcast %15 : vector<1x1x32xf32> to vector<4x64x32xf32>
    %17 = arith.mulf %14, %16 : vector<4x64x32xf32>
    %cst_14 = arith.constant dense<0.000000e+00> : vector<4x64xf32>
    %18 = vector.multi_reduction <add>, %17, %cst_14 [2] : vector<4x64x32xf32> to vector<4x64xf32>
    %c0_15 = arith.constant 0 : index
    %c0_16 = arith.constant 0 : index
    %19 = vector.load %arg14[%c0_15, %c0_16] : memref<4x64xf32, #tpu.memory_space<vmem>>, vector<4x64xf32>
    tpu.vector_store %arg14[%c0_15, %c0_16], %18 {strides = array<i32>} : memref<4x64xf32, #tpu.memory_space<vmem>>, vector<4x64xf32>,
    %cst_17 = arith.constant dense<0.000000e+00> : vector<2x32xf32>
    %20 = vector.multi_reduction <add>, %11, %cst_17 [1] : vector<2x64x32xf32> to vector<2x32xf32>
    %cst_18 = arith.constant 6.400000e+01 : f32
    %21 = vector.broadcast %cst_18 : f32 to vector<2x32xf32>
    %22 = arith.divf %20, %21 : vector<2x32xf32>
    %c0_19 = arith.constant 0 : index
    %c0_20 = arith.constant 0 : index
    %23 = vector.load %arg10[%c0_19, %c0_20] : memref<1x32xf32, #tpu.memory_space<vmem>>, vector<1x32xf32>
    %c0_21 = arith.constant 0 : index
    %c0_22 = arith.constant 0 : index
    %24 = vector.load %arg11[%c0_21, %c0_22] : memref<1x32xf32, #tpu.memory_space<vmem>>, vector<1x32xf32>
    %cst_23 = arith.constant 0.000000e+00 : f32
    %25 = vector.broadcast %cst_23 : f32 to vector<32x32xf32>
    %c0_24 = arith.constant 0 : index
    %c0_25 = arith.constant 0 : index
    %c0_26 = arith.constant 0 : index
    %26 = vector.load %arg3[%c0_24, %c0_25, %c0_26] : memref<9x32x32xbf16, #tpu.memory_space<vmem>>, vector<1x32x32xbf16>
    %27 = vector.shape_cast %26 : vector<1x32x32xbf16> to vector<32x32xbf16>
    %cst_27 = arith.constant dense<0.000000e+00> : vector<32x32xf32>
    %28 = tpu.matmul %27, %0, %cst_27 {dimension_numbers = #tpu.dot_dimension_numbers<[1], [0], [0], [1], [0, 0, 1, 1], [], []>} : vector<32x32xbf16>, vector<32x32xbf16>, vector<32x32xf32> -> vector<32x32xf32>
    %29 = vector.broadcast %1 : vector<1x32xf32> to vector<32x32xf32>
    %30 = arith.mulf %28, %29 : vector<32x32xf32>
    %31 = vector.broadcast %2 : vector<1x32xf32> to vector<32x32xf32>
    %32 = arith.addf %30, %31 : vector<32x32xf32>
    %cst_28 = arith.constant 0.000000e+00 : f32
    %33 = vector.broadcast %cst_28 : f32 to vector<32x32xf32>
    %34 = arith.maximumf %32, %33 : vector<32x32xf32>
    %c0_29 = arith.constant 0 : index
    %c0_30 = arith.constant 0 : index
    %c0_31 = arith.constant 0 : index
    %35 = vector.load %arg8[%c0_29, %c0_30, %c0_31] : memref<9x32x32xbf16, #tpu.memory_space<vmem>>, vector<1x32x32xbf16>
    %36 = vector.shape_cast %35 : vector<1x32x32xbf16> to vector<32x32xbf16>
    %cst_32 = arith.constant dense<0.000000e+00> : vector<32x32xf32>
    %37 = tpu.matmul %27, %36, %cst_32 {dimension_numbers = #tpu.dot_dimension_numbers<[1], [0], [0], [1], [0, 0, 1, 1], [], []>} : vector<32x32xbf16>, vector<32x32xbf16>, vector<32x32xf32> -> vector<32x32xf32>
    %38 = arith.addf %25, %37 : vector<32x32xf32>
    %39 = arith.truncf %34 : vector<32x32xf32> to vector<32x32xbf16>
    %c0_33 = arith.constant 0 : index
    %c0_34 = arith.constant 0 : index
    %c0_35 = arith.constant 0 : index
    %40 = vector.load %arg9[%c0_33, %c0_34, %c0_35] : memref<9x32x32xbf16, #tpu.memory_space<vmem>>, vector<1x32x32xbf16>
    %41 = vector.shape_cast %40 : vector<1x32x32xbf16> to vector<32x32xbf16>
    %cst_36 = arith.constant dense<0.000000e+00> : vector<32x32xf32>
    %42 = tpu.matmul %39, %41, %cst_36 {dimension_numbers = #tpu.dot_dimension_numbers<[1], [0], [0], [1], [0, 0, 1, 1], [], []>} : vector<32x32xbf16>, vector<32x32xbf16>, vector<32x32xf32> -> vector<32x32xf32>
    %43 = arith.addf %38, %42 : vector<32x32xf32>
    %c1 = arith.constant 1 : index
    %c0_37 = arith.constant 0 : index
    %c0_38 = arith.constant 0 : index
    %44 = vector.load %arg3[%c1, %c0_37, %c0_38] : memref<9x32x32xbf16, #tpu.memory_space<vmem>>, vector<1x32x32xbf16>
    %45 = vector.shape_cast %44 : vector<1x32x32xbf16> to vector<32x32xbf16>
    %cst_39 = arith.constant dense<0.000000e+00> : vector<32x32xf32>
    %46 = tpu.matmul %45, %0, %cst_39 {dimension_numbers = #tpu.dot_dimension_numbers<[1], [0], [0], [1], [0, 0, 1, 1], [], []>} : vector<32x32xbf16>, vector<32x32xbf16>, vector<32x32xf32> -> vector<32x32xf32>
    %47 = vector.broadcast %1 : vector<1x32xf32> to vector<32x32xf32>
    %48 = arith.mulf %46, %47 : vector<32x32xf32>
    %49 = vector.broadcast %2 : vector<1x32xf32> to vector<32x32xf32>
    %50 = arith.addf %48, %49 : vector<32x32xf32>
    %cst_40 = arith.constant 0.000000e+00 : f32
    %51 = vector.broadcast %cst_40 : f32 to vector<32x32xf32>
    %52 = arith.maximumf %50, %51 : vector<32x32xf32>
    %c1_41 = arith.constant 1 : index
    %c0_42 = arith.constant 0 : index
    %c0_43 = arith.constant 0 : index
    %53 = vector.load %arg8[%c1_41, %c0_42, %c0_43] : memref<9x32x32xbf16, #tpu.memory_space<vmem>>, vector<1x32x32xbf16>
    %54 = vector.shape_cast %53 : vector<1x32x32xbf16> to vector<32x32xbf16>
    %cst_44 = arith.constant dense<0.000000e+00> : vector<32x32xf32>
    %55 = tpu.matmul %45, %54, %cst_44 {dimension_numbers = #tpu.dot_dimension_numbers<[1], [0], [0], [1], [0, 0, 1, 1], [], []>} : vector<32x32xbf16>, vector<32x32xbf16>, vector<32x32xf32> -> vector<32x32xf32>
    %56 = arith.addf %43, %55 : vector<32x32xf32>
    %57 = arith.truncf %52 : vector<32x32xf32> to vector<32x32xbf16>
    %c1_45 = arith.constant 1 : index
    %c0_46 = arith.constant 0 : index
    %c0_47 = arith.constant 0 : index
    %58 = vector.load %arg9[%c1_45, %c0_46, %c0_47] : memref<9x32x32xbf16, #tpu.memory_space<vmem>>, vector<1x32x32xbf16>
    %59 = vector.shape_cast %58 : vector<1x32x32xbf16> to vector<32x32xbf16>
    %cst_48 = arith.constant dense<0.000000e+00> : vector<32x32xf32>
    %60 = tpu.matmul %57, %59, %cst_48 {dimension_numbers = #tpu.dot_dimension_numbers<[1], [0], [0], [1], [0, 0, 1, 1], [], []>} : vector<32x32xbf16>, vector<32x32xbf16>, vector<32x32xf32> -> vector<32x32xf32>
    %61 = arith.addf %56, %60 : vector<32x32xf32>
    %c2 = arith.constant 2 : index
    %c0_49 = arith.constant 0 : index
    %c0_50 = arith.constant 0 : index
    %62 = vector.load %arg3[%c2, %c0_49, %c0_50] : memref<9x32x32xbf16, #tpu.memory_space<vmem>>, vector<1x32x32xbf16>
    %63 = vector.shape_cast %62 : vector<1x32x32xbf16> to vector<32x32xbf16>
    %cst_51 = arith.constant dense<0.000000e+00> : vector<32x32xf32>
    %64 = tpu.matmul %63, %0, %cst_51 {dimension_numbers = #tpu.dot_dimension_numbers<[1], [0], [0], [1], [0, 0, 1, 1], [], []>} : vector<32x32xbf16>, vector<32x32xbf16>, vector<32x32xf32> -> vector<32x32xf32>
    %65 = vector.broadcast %1 : vector<1x32xf32> to vector<32x32xf32>
    %66 = arith.mulf %64, %65 : vector<32x32xf32>
    %67 = vector.broadcast %2 : vector<1x32xf32> to vector<32x32xf32>
    %68 = arith.addf %66, %67 : vector<32x32xf32>
    %cst_52 = arith.constant 0.000000e+00 : f32
    %69 = vector.broadcast %cst_52 : f32 to vector<32x32xf32>
    %70 = arith.maximumf %68, %69 : vector<32x32xf32>
    %c2_53 = arith.constant 2 : index
    %c0_54 = arith.constant 0 : index
    %c0_55 = arith.constant 0 : index
    %71 = vector.load %arg8[%c2_53, %c0_54, %c0_55] : memref<9x32x32xbf16, #tpu.memory_space<vmem>>, vector<1x32x32xbf16>
    %72 = vector.shape_cast %71 : vector<1x32x32xbf16> to vector<32x32xbf16>
    %cst_56 = arith.constant dense<0.000000e+00> : vector<32x32xf32>
    %73 = tpu.matmul %63, %72, %cst_56 {dimension_numbers = #tpu.dot_dimension_numbers<[1], [0], [0], [1], [0, 0, 1, 1], [], []>} : vector<32x32xbf16>, vector<32x32xbf16>, vector<32x32xf32> -> vector<32x32xf32>
    %74 = arith.addf %61, %73 : vector<32x32xf32>
    %75 = arith.truncf %70 : vector<32x32xf32> to vector<32x32xbf16>
    %c2_57 = arith.constant 2 : index
    %c0_58 = arith.constant 0 : index
    %c0_59 = arith.constant 0 : index
    %76 = vector.load %arg9[%c2_57, %c0_58, %c0_59] : memref<9x32x32xbf16, #tpu.memory_space<vmem>>, vector<1x32x32xbf16>
    %77 = vector.shape_cast %76 : vector<1x32x32xbf16> to vector<32x32xbf16>
    %cst_60 = arith.constant dense<0.000000e+00> : vector<32x32xf32>
    %78 = tpu.matmul %75, %77, %cst_60 {dimension_numbers = #tpu.dot_dimension_numbers<[1], [0], [0], [1], [0, 0, 1, 1], [], []>} : vector<32x32xbf16>, vector<32x32xbf16>, vector<32x32xf32> -> vector<32x32xf32>
    %79 = arith.addf %74, %78 : vector<32x32xf32>
    %c3 = arith.constant 3 : index
    %c0_61 = arith.constant 0 : index
    %c0_62 = arith.constant 0 : index
    %80 = vector.load %arg3[%c3, %c0_61, %c0_62] : memref<9x32x32xbf16, #tpu.memory_space<vmem>>, vector<1x32x32xbf16>
    %81 = vector.shape_cast %80 : vector<1x32x32xbf16> to vector<32x32xbf16>
    %cst_63 = arith.constant dense<0.000000e+00> : vector<32x32xf32>
    %82 = tpu.matmul %81, %0, %cst_63 {dimension_numbers = #tpu.dot_dimension_numbers<[1], [0], [0], [1], [0, 0, 1, 1], [], []>} : vector<32x32xbf16>, vector<32x32xbf16>, vector<32x32xf32> -> vector<32x32xf32>
    %83 = vector.broadcast %1 : vector<1x32xf32> to vector<32x32xf32>
    %84 = arith.mulf %82, %83 : vector<32x32xf32>
    %85 = vector.broadcast %2 : vector<1x32xf32> to vector<32x32xf32>
    %86 = arith.addf %84, %85 : vector<32x32xf32>
    %cst_64 = arith.constant 0.000000e+00 : f32
    %87 = vector.broadcast %cst_64 : f32 to vector<32x32xf32>
    %88 = arith.maximumf %86, %87 : vector<32x32xf32>
    %c3_65 = arith.constant 3 : index
    %c0_66 = arith.constant 0 : index
    %c0_67 = arith.constant 0 : index
    %89 = vector.load %arg8[%c3_65, %c0_66, %c0_67] : memref<9x32x32xbf16, #tpu.memory_space<vmem>>, vector<1x32x32xbf16>
    %90 = vector.shape_cast %89 : vector<1x32x32xbf16> to vector<32x32xbf16>
    %cst_68 = arith.constant dense<0.000000e+00> : vector<32x32xf32>
    %91 = tpu.matmul %81, %90, %cst_68 {dimension_numbers = #tpu.dot_dimension_numbers<[1], [0], [0], [1], [0, 0, 1, 1], [], []>} : vector<32x32xbf16>, vector<32x32xbf16>, vector<32x32xf32> -> vector<32x32xf32>
    %92 = arith.addf %79, %91 : vector<32x32xf32>
    %93 = arith.truncf %88 : vector<32x32xf32> to vector<32x32xbf16>
    %c3_69 = arith.constant 3 : index
    %c0_70 = arith.constant 0 : index
    %c0_71 = arith.constant 0 : index
    %94 = vector.load %arg9[%c3_69, %c0_70, %c0_71] : memref<9x32x32xbf16, #tpu.memory_space<vmem>>, vector<1x32x32xbf16>
    %95 = vector.shape_cast %94 : vector<1x32x32xbf16> to vector<32x32xbf16>
    %cst_72 = arith.constant dense<0.000000e+00> : vector<32x32xf32>
    %96 = tpu.matmul %93, %95, %cst_72 {dimension_numbers = #tpu.dot_dimension_numbers<[1], [0], [0], [1], [0, 0, 1, 1], [], []>} : vector<32x32xbf16>, vector<32x32xbf16>, vector<32x32xf32> -> vector<32x32xf32>
    %97 = arith.addf %92, %96 : vector<32x32xf32>
    %c4 = arith.constant 4 : index
    %c0_73 = arith.constant 0 : index
    %c0_74 = arith.constant 0 : index
    %98 = vector.load %arg3[%c4, %c0_73, %c0_74] : memref<9x32x32xbf16, #tpu.memory_space<vmem>>, vector<1x32x32xbf16>
    %99 = vector.shape_cast %98 : vector<1x32x32xbf16> to vector<32x32xbf16>
    %cst_75 = arith.constant dense<0.000000e+00> : vector<32x32xf32>
    %100 = tpu.matmul %99, %0, %cst_75 {dimension_numbers = #tpu.dot_dimension_numbers<[1], [0], [0], [1], [0, 0, 1, 1], [], []>} : vector<32x32xbf16>, vector<32x32xbf16>, vector<32x32xf32> -> vector<32x32xf32>
    %101 = vector.broadcast %1 : vector<1x32xf32> to vector<32x32xf32>
    %102 = arith.mulf %100, %101 : vector<32x32xf32>
    %103 = vector.broadcast %2 : vector<1x32xf32> to vector<32x32xf32>
    %104 = arith.addf %102, %103 : vector<32x32xf32>
    %cst_76 = arith.constant 0.000000e+00 : f32
    %105 = vector.broadcast %cst_76 : f32 to vector<32x32xf32>
    %106 = arith.maximumf %104, %105 : vector<32x32xf32>
    %c4_77 = arith.constant 4 : index
    %c0_78 = arith.constant 0 : index
    %c0_79 = arith.constant 0 : index
    %107 = vector.load %arg8[%c4_77, %c0_78, %c0_79] : memref<9x32x32xbf16, #tpu.memory_space<vmem>>, vector<1x32x32xbf16>
    %108 = vector.shape_cast %107 : vector<1x32x32xbf16> to vector<32x32xbf16>
    %cst_80 = arith.constant dense<0.000000e+00> : vector<32x32xf32>
    %109 = tpu.matmul %99, %108, %cst_80 {dimension_numbers = #tpu.dot_dimension_numbers<[1], [0], [0], [1], [0, 0, 1, 1], [], []>} : vector<32x32xbf16>, vector<32x32xbf16>, vector<32x32xf32> -> vector<32x32xf32>
    %110 = arith.addf %97, %109 : vector<32x32xf32>
    %111 = arith.truncf %106 : vector<32x32xf32> to vector<32x32xbf16>
    %c4_81 = arith.constant 4 : index
    %c0_82 = arith.constant 0 : index
    %c0_83 = arith.constant 0 : index
    %112 = vector.load %arg9[%c4_81, %c0_82, %c0_83] : memref<9x32x32xbf16, #tpu.memory_space<vmem>>, vector<1x32x32xbf16>
    %113 = vector.shape_cast %112 : vector<1x32x32xbf16> to vector<32x32xbf16>
    %cst_84 = arith.constant dense<0.000000e+00> : vector<32x32xf32>
    %114 = tpu.matmul %111, %113, %cst_84 {dimension_numbers = #tpu.dot_dimension_numbers<[1], [0], [0], [1], [0, 0, 1, 1], [], []>} : vector<32x32xbf16>, vector<32x32xbf16>, vector<32x32xf32> -> vector<32x32xf32>
    %115 = arith.addf %110, %114 : vector<32x32xf32>
    %c5 = arith.constant 5 : index
    %c0_85 = arith.constant 0 : index
    %c0_86 = arith.constant 0 : index
    %116 = vector.load %arg3[%c5, %c0_85, %c0_86] : memref<9x32x32xbf16, #tpu.memory_space<vmem>>, vector<1x32x32xbf16>
    %117 = vector.shape_cast %116 : vector<1x32x32xbf16> to vector<32x32xbf16>
    %cst_87 = arith.constant dense<0.000000e+00> : vector<32x32xf32>
    %118 = tpu.matmul %117, %0, %cst_87 {dimension_numbers = #tpu.dot_dimension_numbers<[1], [0], [0], [1], [0, 0, 1, 1], [], []>} : vector<32x32xbf16>, vector<32x32xbf16>, vector<32x32xf32> -> vector<32x32xf32>
    %119 = vector.broadcast %1 : vector<1x32xf32> to vector<32x32xf32>
    %120 = arith.mulf %118, %119 : vector<32x32xf32>
    %121 = vector.broadcast %2 : vector<1x32xf32> to vector<32x32xf32>
    %122 = arith.addf %120, %121 : vector<32x32xf32>
    %cst_88 = arith.constant 0.000000e+00 : f32
    %123 = vector.broadcast %cst_88 : f32 to vector<32x32xf32>
    %124 = arith.maximumf %122, %123 : vector<32x32xf32>
    %c5_89 = arith.constant 5 : index
    %c0_90 = arith.constant 0 : index
    %c0_91 = arith.constant 0 : index
    %125 = vector.load %arg8[%c5_89, %c0_90, %c0_91] : memref<9x32x32xbf16, #tpu.memory_space<vmem>>, vector<1x32x32xbf16>
    %126 = vector.shape_cast %125 : vector<1x32x32xbf16> to vector<32x32xbf16>
    %cst_92 = arith.constant dense<0.000000e+00> : vector<32x32xf32>
    %127 = tpu.matmul %117, %126, %cst_92 {dimension_numbers = #tpu.dot_dimension_numbers<[1], [0], [0], [1], [0, 0, 1, 1], [], []>} : vector<32x32xbf16>, vector<32x32xbf16>, vector<32x32xf32> -> vector<32x32xf32>
    %128 = arith.addf %115, %127 : vector<32x32xf32>
    %129 = arith.truncf %124 : vector<32x32xf32> to vector<32x32xbf16>
    %c5_93 = arith.constant 5 : index
    %c0_94 = arith.constant 0 : index
    %c0_95 = arith.constant 0 : index
    %130 = vector.load %arg9[%c5_93, %c0_94, %c0_95] : memref<9x32x32xbf16, #tpu.memory_space<vmem>>, vector<1x32x32xbf16>
    %131 = vector.shape_cast %130 : vector<1x32x32xbf16> to vector<32x32xbf16>
    %cst_96 = arith.constant dense<0.000000e+00> : vector<32x32xf32>
    %132 = tpu.matmul %129, %131, %cst_96 {dimension_numbers = #tpu.dot_dimension_numbers<[1], [0], [0], [1], [0, 0, 1, 1], [], []>} : vector<32x32xbf16>, vector<32x32xbf16>, vector<32x32xf32> -> vector<32x32xf32>
    %133 = arith.addf %128, %132 : vector<32x32xf32>
    %c6 = arith.constant 6 : index
    %c0_97 = arith.constant 0 : index
    %c0_98 = arith.constant 0 : index
    %134 = vector.load %arg3[%c6, %c0_97, %c0_98] : memref<9x32x32xbf16, #tpu.memory_space<vmem>>, vector<1x32x32xbf16>
    %135 = vector.shape_cast %134 : vector<1x32x32xbf16> to vector<32x32xbf16>
    %cst_99 = arith.constant dense<0.000000e+00> : vector<32x32xf32>
    %136 = tpu.matmul %135, %0, %cst_99 {dimension_numbers = #tpu.dot_dimension_numbers<[1], [0], [0], [1], [0, 0, 1, 1], [], []>} : vector<32x32xbf16>, vector<32x32xbf16>, vector<32x32xf32> -> vector<32x32xf32>
    %137 = vector.broadcast %1 : vector<1x32xf32> to vector<32x32xf32>
    %138 = arith.mulf %136, %137 : vector<32x32xf32>
    %139 = vector.broadcast %2 : vector<1x32xf32> to vector<32x32xf32>
    %140 = arith.addf %138, %139 : vector<32x32xf32>
    %cst_100 = arith.constant 0.000000e+00 : f32
    %141 = vector.broadcast %cst_100 : f32 to vector<32x32xf32>
    %142 = arith.maximumf %140, %141 : vector<32x32xf32>
    %c6_101 = arith.constant 6 : index
    %c0_102 = arith.constant 0 : index
    %c0_103 = arith.constant 0 : index
    %143 = vector.load %arg8[%c6_101, %c0_102, %c0_103] : memref<9x32x32xbf16, #tpu.memory_space<vmem>>, vector<1x32x32xbf16>
    %144 = vector.shape_cast %143 : vector<1x32x32xbf16> to vector<32x32xbf16>
    %cst_104 = arith.constant dense<0.000000e+00> : vector<32x32xf32>
    %145 = tpu.matmul %135, %144, %cst_104 {dimension_numbers = #tpu.dot_dimension_numbers<[1], [0], [0], [1], [0, 0, 1, 1], [], []>} : vector<32x32xbf16>, vector<32x32xbf16>, vector<32x32xf32> -> vector<32x32xf32>
    %146 = arith.addf %133, %145 : vector<32x32xf32>
    %147 = arith.truncf %142 : vector<32x32xf32> to vector<32x32xbf16>
    %c6_105 = arith.constant 6 : index
    %c0_106 = arith.constant 0 : index
    %c0_107 = arith.constant 0 : index
    %148 = vector.load %arg9[%c6_105, %c0_106, %c0_107] : memref<9x32x32xbf16, #tpu.memory_space<vmem>>, vector<1x32x32xbf16>
    %149 = vector.shape_cast %148 : vector<1x32x32xbf16> to vector<32x32xbf16>
    %cst_108 = arith.constant dense<0.000000e+00> : vector<32x32xf32>
    %150 = tpu.matmul %147, %149, %cst_108 {dimension_numbers = #tpu.dot_dimension_numbers<[1], [0], [0], [1], [0, 0, 1, 1], [], []>} : vector<32x32xbf16>, vector<32x32xbf16>, vector<32x32xf32> -> vector<32x32xf32>
    %151 = arith.addf %146, %150 : vector<32x32xf32>
    %c7 = arith.constant 7 : index
    %c0_109 = arith.constant 0 : index
    %c0_110 = arith.constant 0 : index
    %152 = vector.load %arg3[%c7, %c0_109, %c0_110] : memref<9x32x32xbf16, #tpu.memory_space<vmem>>, vector<1x32x32xbf16>
    %153 = vector.shape_cast %152 : vector<1x32x32xbf16> to vector<32x32xbf16>
    %cst_111 = arith.constant dense<0.000000e+00> : vector<32x32xf32>
    %154 = tpu.matmul %153, %0, %cst_111 {dimension_numbers = #tpu.dot_dimension_numbers<[1], [0], [0], [1], [0, 0, 1, 1], [], []>} : vector<32x32xbf16>, vector<32x32xbf16>, vector<32x32xf32> -> vector<32x32xf32>
    %155 = vector.broadcast %1 : vector<1x32xf32> to vector<32x32xf32>
    %156 = arith.mulf %154, %155 : vector<32x32xf32>
    %157 = vector.broadcast %2 : vector<1x32xf32> to vector<32x32xf32>
    %158 = arith.addf %156, %157 : vector<32x32xf32>
    %cst_112 = arith.constant 0.000000e+00 : f32
    %159 = vector.broadcast %cst_112 : f32 to vector<32x32xf32>
    %160 = arith.maximumf %158, %159 : vector<32x32xf32>
    %c7_113 = arith.constant 7 : index
    %c0_114 = arith.constant 0 : index
    %c0_115 = arith.constant 0 : index
    %161 = vector.load %arg8[%c7_113, %c0_114, %c0_115] : memref<9x32x32xbf16, #tpu.memory_space<vmem>>, vector<1x32x32xbf16>
    %162 = vector.shape_cast %161 : vector<1x32x32xbf16> to vector<32x32xbf16>
    %cst_116 = arith.constant dense<0.000000e+00> : vector<32x32xf32>
    %163 = tpu.matmul %153, %162, %cst_116 {dimension_numbers = #tpu.dot_dimension_numbers<[1], [0], [0], [1], [0, 0, 1, 1], [], []>} : vector<32x32xbf16>, vector<32x32xbf16>, vector<32x32xf32> -> vector<32x32xf32>
    %164 = arith.addf %151, %163 : vector<32x32xf32>
    %165 = arith.truncf %160 : vector<32x32xf32> to vector<32x32xbf16>
    %c7_117 = arith.constant 7 : index
    %c0_118 = arith.constant 0 : index
    %c0_119 = arith.constant 0 : index
    %166 = vector.load %arg9[%c7_117, %c0_118, %c0_119] : memref<9x32x32xbf16, #tpu.memory_space<vmem>>, vector<1x32x32xbf16>
    %167 = vector.shape_cast %166 : vector<1x32x32xbf16> to vector<32x32xbf16>
    %cst_120 = arith.constant dense<0.000000e+00> : vector<32x32xf32>
    %168 = tpu.matmul %165, %167, %cst_120 {dimension_numbers = #tpu.dot_dimension_numbers<[1], [0], [0], [1], [0, 0, 1, 1], [], []>} : vector<32x32xbf16>, vector<32x32xbf16>, vector<32x32xf32> -> vector<32x32xf32>
    %169 = arith.addf %164, %168 : vector<32x32xf32>
    %c8 = arith.constant 8 : index
    %c0_121 = arith.constant 0 : index
    %c0_122 = arith.constant 0 : index
    %170 = vector.load %arg3[%c8, %c0_121, %c0_122] : memref<9x32x32xbf16, #tpu.memory_space<vmem>>, vector<1x32x32xbf16>
    %171 = vector.shape_cast %170 : vector<1x32x32xbf16> to vector<32x32xbf16>
    %cst_123 = arith.constant dense<0.000000e+00> : vector<32x32xf32>
    %172 = tpu.matmul %171, %0, %cst_123 {dimension_numbers = #tpu.dot_dimension_numbers<[1], [0], [0], [1], [0, 0, 1, 1], [], []>} : vector<32x32xbf16>, vector<32x32xbf16>, vector<32x32xf32> -> vector<32x32xf32>
    %173 = vector.broadcast %1 : vector<1x32xf32> to vector<32x32xf32>
    %174 = arith.mulf %172, %173 : vector<32x32xf32>
    %175 = vector.broadcast %2 : vector<1x32xf32> to vector<32x32xf32>
    %176 = arith.addf %174, %175 : vector<32x32xf32>
    %cst_124 = arith.constant 0.000000e+00 : f32
    %177 = vector.broadcast %cst_124 : f32 to vector<32x32xf32>
    %178 = arith.maximumf %176, %177 : vector<32x32xf32>
    %c8_125 = arith.constant 8 : index
    %c0_126 = arith.constant 0 : index
    %c0_127 = arith.constant 0 : index
    %179 = vector.load %arg8[%c8_125, %c0_126, %c0_127] : memref<9x32x32xbf16, #tpu.memory_space<vmem>>, vector<1x32x32xbf16>
    %180 = vector.shape_cast %179 : vector<1x32x32xbf16> to vector<32x32xbf16>
    %cst_128 = arith.constant dense<0.000000e+00> : vector<32x32xf32>
    %181 = tpu.matmul %171, %180, %cst_128 {dimension_numbers = #tpu.dot_dimension_numbers<[1], [0], [0], [1], [0, 0, 1, 1], [], []>} : vector<32x32xbf16>, vector<32x32xbf16>, vector<32x32xf32> -> vector<32x32xf32>
    %182 = arith.addf %169, %181 : vector<32x32xf32>
    %183 = arith.truncf %178 : vector<32x32xf32> to vector<32x32xbf16>
    %c8_129 = arith.constant 8 : index
    %c0_130 = arith.constant 0 : index
    %c0_131 = arith.constant 0 : index
    %184 = vector.load %arg9[%c8_129, %c0_130, %c0_131] : memref<9x32x32xbf16, #tpu.memory_space<vmem>>, vector<1x32x32xbf16>
    %185 = vector.shape_cast %184 : vector<1x32x32xbf16> to vector<32x32xbf16>
    %cst_132 = arith.constant dense<0.000000e+00> : vector<32x32xf32>
    %186 = tpu.matmul %183, %185, %cst_132 {dimension_numbers = #tpu.dot_dimension_numbers<[1], [0], [0], [1], [0, 0, 1, 1], [], []>} : vector<32x32xbf16>, vector<32x32xbf16>, vector<32x32xf32> -> vector<32x32xf32>
    %187 = arith.addf %182, %186 : vector<32x32xf32>
    %188 = vector.broadcast %23 : vector<1x32xf32> to vector<32x32xf32>
    %189 = arith.mulf %187, %188 : vector<32x32xf32>
    %190 = vector.broadcast %24 : vector<1x32xf32> to vector<32x32xf32>
    %191 = arith.addf %189, %190 : vector<32x32xf32>
    %cst_133 = arith.constant 0.000000e+00 : f32
    %192 = vector.broadcast %cst_133 : f32 to vector<32x32xf32>
    %193 = arith.maximumf %191, %192 : vector<32x32xf32>
    %c0_134 = arith.constant 0 : index
    %c0_135 = arith.constant 0 : index
    %194 = vector.load %arg4[%c0_134, %c0_135] : memref<32x1xf32, #tpu.memory_space<vmem>>, vector<32x1xf32>
    %195 = vector.broadcast %194 : vector<32x1xf32> to vector<32x32xf32>
    %196 = arith.mulf %193, %195 : vector<32x32xf32>
    %197 = vector.shape_cast %196 : vector<32x32xf32> to vector<2x16x32xf32>
    %cst_136 = arith.constant dense<0.000000e+00> : vector<2x32xf32>
    %198 = vector.multi_reduction <add>, %197, %cst_136 [1] : vector<2x16x32xf32> to vector<2x32xf32>
    %cst_137 = arith.constant 0.111111112 : f32
    %199 = vector.broadcast %cst_137 : f32 to vector<2x32xf32>
    %200 = arith.mulf %198, %199 : vector<2x32xf32>
    %c0_138 = arith.constant 0 : index
    %c0_139 = arith.constant 0 : index
    %201 = vector.load %arg12[%c0_138, %c0_139] : memref<32x128xbf16, #tpu.memory_space<vmem>>, vector<32x128xbf16>
    %c0_140 = arith.constant 0 : index
    %c0_141 = arith.constant 0 : index
    %202 = vector.load %arg2[%c0_140, %c0_141] : memref<2x32xf32, #tpu.memory_space<vmem>>, vector<2x32xf32>
    %203 = arith.truncf %22 : vector<2x32xf32> to vector<2x32xbf16>
    %cst_142 = arith.constant dense<0.000000e+00> : vector<2x128xf32>
    %204 = tpu.matmul %203, %201, %cst_142 {dimension_numbers = #tpu.dot_dimension_numbers<[1], [0], [0], [1], [0, 0, 1, 1], [], []>} : vector<2x32xbf16>, vector<32x128xbf16>, vector<2x128xf32> -> vector<2x128xf32>
    %c0_143 = arith.constant 0 : index
    %c0_144 = arith.constant 0 : index
    %205 = vector.load %arg15[%c0_143, %c0_144] : memref<2x128xf32, #tpu.memory_space<vmem>>, vector<2x128xf32>
    tpu.vector_store %arg15[%c0_143, %c0_144], %204 {strides = array<i32>} : memref<2x128xf32, #tpu.memory_space<vmem>>, vector<2x128xf32>,
    %206 = arith.truncf %202 : vector<2x32xf32> to vector<2x32xbf16>
    %cst_145 = arith.constant dense<0.000000e+00> : vector<2x128xf32>
    %207 = tpu.matmul %206, %201, %cst_145 {dimension_numbers = #tpu.dot_dimension_numbers<[1], [0], [0], [1], [0, 0, 1, 1], [], []>} : vector<2x32xbf16>, vector<32x128xbf16>, vector<2x128xf32> -> vector<2x128xf32>
    %c0_146 = arith.constant 0 : index
    %c0_147 = arith.constant 0 : index
    %208 = vector.load %arg16[%c0_146, %c0_147] : memref<2x128xf32, #tpu.memory_space<vmem>>, vector<2x128xf32>
    tpu.vector_store %arg16[%c0_146, %c0_147], %207 {strides = array<i32>} : memref<2x128xf32, #tpu.memory_space<vmem>>, vector<2x128xf32>,
    %209 = arith.truncf %200 : vector<2x32xf32> to vector<2x32xbf16>
    %cst_148 = arith.constant dense<0.000000e+00> : vector<2x128xf32>
    %210 = tpu.matmul %209, %201, %cst_148 {dimension_numbers = #tpu.dot_dimension_numbers<[1], [0], [0], [1], [0, 0, 1, 1], [], []>} : vector<2x32xbf16>, vector<32x128xbf16>, vector<2x128xf32> -> vector<2x128xf32>
    %c0_149 = arith.constant 0 : index
    %c0_150 = arith.constant 0 : index
    %211 = vector.load %arg17[%c0_149, %c0_150] : memref<2x128xf32, #tpu.memory_space<vmem>>, vector<2x128xf32>
    tpu.vector_store %arg17[%c0_149, %c0_150], %210 {strides = array<i32>} : memref<2x128xf32, #tpu.memory_space<vmem>>, vector<2x128xf32>,
    %212 = arith.truncf %22 : vector<2x32xf32> to vector<2x32xbf16>
    %cst_151 = arith.constant dense<0.000000e+00> : vector<2x2xf32>
    %213 = tpu.matmul %212, %212, %cst_151 {dimension_numbers = #tpu.dot_dimension_numbers<[1], [1], [0], [0], [0, 0, 1, 0], [], []>} : vector<2x32xbf16>, vector<2x32xbf16>, vector<2x2xf32> -> vector<2x2xf32>
    %214 = arith.mulf %213, %213 : vector<2x2xf32>
    %cst_152 = arith.constant dense<0.000000e+00> : vector<2xf32>
    %215 = vector.multi_reduction <add>, %214, %cst_152 [1] : vector<2x2xf32> to vector<2xf32>
    %216 = vector.shape_cast %215 : vector<2xf32> to vector<2x1xf32>
    %cst_153 = arith.constant 1.000000e-24 : f32
    %217 = vector.broadcast %cst_153 : f32 to vector<2x1xf32>
    %218 = arith.maximumf %216, %217 : vector<2x1xf32>
    %219 = math.rsqrt %218 : vector<2x1xf32>
    %220 = vector.broadcast %219 : vector<2x1xf32> to vector<2x2xf32>
    %221 = arith.mulf %213, %220 : vector<2x2xf32>
    %c0_154 = arith.constant 0 : index
    %c0_155 = arith.constant 0 : index
    %222 = vector.load %arg18[%c0_154, %c0_155] : memref<2x2xf32, #tpu.memory_space<vmem>>, vector<2x2xf32>
    tpu.vector_store %arg18[%c0_154, %c0_155], %221 {strides = array<i32>} : memref<2x2xf32, #tpu.memory_space<vmem>>, vector<2x2xf32>,
    %223 = arith.truncf %202 : vector<2x32xf32> to vector<2x32xbf16>
    %cst_156 = arith.constant dense<0.000000e+00> : vector<2x2xf32>
    %224 = tpu.matmul %223, %223, %cst_156 {dimension_numbers = #tpu.dot_dimension_numbers<[1], [1], [0], [0], [0, 0, 1, 0], [], []>} : vector<2x32xbf16>, vector<2x32xbf16>, vector<2x2xf32> -> vector<2x2xf32>
    %225 = arith.mulf %224, %224 : vector<2x2xf32>
    %cst_157 = arith.constant dense<0.000000e+00> : vector<2xf32>
    %226 = vector.multi_reduction <add>, %225, %cst_157 [1] : vector<2x2xf32> to vector<2xf32>
    %227 = vector.shape_cast %226 : vector<2xf32> to vector<2x1xf32>
    %cst_158 = arith.constant 1.000000e-24 : f32
    %228 = vector.broadcast %cst_158 : f32 to vector<2x1xf32>
    %229 = arith.maximumf %227, %228 : vector<2x1xf32>
    %230 = math.rsqrt %229 : vector<2x1xf32>
    %231 = vector.broadcast %230 : vector<2x1xf32> to vector<2x2xf32>
    %232 = arith.mulf %224, %231 : vector<2x2xf32>
    %c0_159 = arith.constant 0 : index
    %c0_160 = arith.constant 0 : index
    %233 = vector.load %arg19[%c0_159, %c0_160] : memref<2x2xf32, #tpu.memory_space<vmem>>, vector<2x2xf32>
    tpu.vector_store %arg19[%c0_159, %c0_160], %232 {strides = array<i32>} : memref<2x2xf32, #tpu.memory_space<vmem>>, vector<2x2xf32>,
    return
  }
}

</mosaic_0001>

<llo_original>
// kernel: facial_forward_train.1
$region0: #{facial_forward_train.1}
  #allocation0 [shape = 'u32[]', space=smem, size = 0x4, offset = 0x4, fixed_abs, tag = 'smem constant byte address 0x4 - core index']
  #allocation1 [shape = 'u32[72,128]{1,0:T(1,128)}', space=vmem, size = 0x9000, scoped, tag = 'internal scratch']
  %s0 = inlined_call_operand.vmem [shape: bf16[128,32], index: 0, kind: input, shape index: {}]
  %s1 = inlined_call_operand.vmem [shape: bf16[2,64,32], index: 1, kind: input, shape index: {}]
  %s2 = inlined_call_operand.vmem [shape: f32[2,32], index: 2, kind: input, shape index: {}]
  %s3 = inlined_call_operand.vmem [shape: bf16[9,32,32], index: 3, kind: input, shape index: {}]
  %s4 = inlined_call_operand.vmem [shape: f32[32,1], index: 4, kind: input, shape index: {}]
  %s5 = inlined_call_operand.vmem [shape: bf16[32,32], index: 5, kind: input, shape index: {}]
  %s6 = inlined_call_operand.vmem [shape: f32[1,32], index: 6, kind: input, shape index: {}]
  %s7 = inlined_call_operand.vmem [shape: f32[1,32], index: 7, kind: input, shape index: {}]
  %s8 = inlined_call_operand.vmem [shape: bf16[9,32,32], index: 8, kind: input, shape index: {}]
  %s9 = inlined_call_operand.vmem [shape: bf16[9,32,32], index: 9, kind: input, shape index: {}]
  %s10 = inlined_call_operand.vmem [shape: f32[1,32], index: 10, kind: input, shape index: {}]
  %s11 = inlined_call_operand.vmem [shape: f32[1,32], index: 11, kind: input, shape index: {}]
  %s12 = inlined_call_operand.vmem [shape: bf16[32,128], index: 12, kind: input, shape index: {}]
  %s13 = inlined_call_operand.vmem [shape: f32[1,1,32], index: 13, kind: input, shape index: {}]
  %s14 = inlined_call_operand.vmem [shape: f32[4,64], index: 14, kind: output, shape index: {0}]
  %s15 = inlined_call_operand.vmem [shape: f32[2,128], index: 15, kind: output, shape index: {1}]
  %s16 = inlined_call_operand.vmem [shape: f32[2,128], index: 16, kind: output, shape index: {2}]
  %s17 = inlined_call_operand.vmem [shape: f32[2,128], index: 17, kind: output, shape index: {3}]
  %s18 = inlined_call_operand.hbm [shape: f32[2,2], index: 18, kind: output, shape index: {4}]
  %s19 = inlined_call_operand.hbm [shape: f32[2,2], index: 19, kind: output, shape index: {5}]
  %20 = xla_tuple %s14, %s15, %s16, %s17, %s18, %s19
  %s21 = sld [smem:[#allocation0]]
  $region106: #{facial_forward_train.1} parent=0
    _
  %s23 = ssub.s32 1, %s21
  %s24 = scalar_select 0, %s23, %s21
  $region1: #{facial_forward_train.1} parent=0
    #allocation2 [shape = 'u8[1024]{0}', space=vmem, size = 0x400, scoped, tag = 'output window, operand 4, single buffered']
    #allocation3 [shape = 's32[1]{0}', space=sflag, size = 0x4, scoped, tag = 'scoped memory for facial_forward_train.1']
    #allocation4 [shape = 'u8[1024]{0}', space=vmem, size = 0x400, scoped, tag = 'output window, operand 5, single buffered']
    #allocation5 [shape = 's32[1]{0}', space=sflag, size = 0x4, scoped, tag = 'scoped memory for facial_forward_train.1']
    %25 = vsyncpa [#allocation3], 0
    %26 = vsyncpa [#allocation5], 0
    // Predicated region
    $region2: #{facial_forward_train.1} parent=1 // pred_check
      _
    $region3: #{facial_forward_train.1} parent=1 // pred_check_branch
      %28 = sbr.rel (0) target = $region5
    $region4: #{facial_forward_train.1} parent=1 // pred_region
      _
    $region5: #{facial_forward_train.1} parent=1 // pred_fallthru
      _
    // Predicated region
    $region6: #{facial_forward_train.1} parent=1 // pred_check
      _
    $region7: #{facial_forward_train.1} parent=1 // pred_check_branch
      %30 = sbr.rel (0) target = $region9
    $region8: #{facial_forward_train.1} parent=1 // pred_region
      _
    $region9: #{facial_forward_train.1} parent=1 // pred_fallthru
      _
    // Predicated region
    $region10: #{facial_forward_train.1} parent=1 // pred_check
      _
    $region11: #{facial_forward_train.1} parent=1 // pred_check_branch
      %32 = sbr.rel (0) target = $region13
    $region12: #{facial_forward_train.1} parent=1 // pred_region
      _
    $region13: #{facial_forward_train.1} parent=1 // pred_fallthru
      _
    // Predicated region
    $region14: #{facial_forward_train.1} parent=1 // pred_check
      _
    $region15: #{facial_forward_train.1} parent=1 // pred_check_branch
      %34 = sbr.rel (0) target = $region17
    $region16: #{facial_forward_train.1} parent=1 // pred_region
      _
    $region17: #{facial_forward_train.1} parent=1 // pred_fallthru
      _
    // Predicated region
    $region18: #{facial_forward_train.1} parent=1 // pred_check
      _
    $region19: #{facial_forward_train.1} parent=1 // pred_check_branch
      %36 = sbr.rel (0) target = $region21
    $region20: #{facial_forward_train.1} parent=1 // pred_region
      _
    $region21: #{facial_forward_train.1} parent=1 // pred_fallthru
      _
    // Predicated region
    $region22: #{facial_forward_train.1} parent=1 // pred_check
      _
    $region23: #{facial_forward_train.1} parent=1 // pred_check_branch
      %38 = sbr.rel (0) target = $region25
    $region24: #{facial_forward_train.1} parent=1 // pred_region
      _
    $region25: #{facial_forward_train.1} parent=1 // pred_fallthru
      _
    // Predicated region
    $region26: #{facial_forward_train.1} parent=1 // pred_check
      _
    $region27: #{facial_forward_train.1} parent=1 // pred_check_branch
      %40 = sbr.rel (0) target = $region29
    $region28: #{facial_forward_train.1} parent=1 // pred_region
      _
    $region29: #{facial_forward_train.1} parent=1 // pred_fallthru
      _
    // Predicated region
    $region30: #{facial_forward_train.1} parent=1 // pred_check
      _
    $region31: #{facial_forward_train.1} parent=1 // pred_check_branch
      %42 = sbr.rel (0) target = $region33
    $region32: #{facial_forward_train.1} parent=1 // pred_region
      _
    $region33: #{facial_forward_train.1} parent=1 // pred_fallthru
      _
    // Predicated region
    $region34: #{facial_forward_train.1} parent=1 // pred_check
      _
    $region35: #{facial_forward_train.1} parent=1 // pred_check_branch
      %44 = sbr.rel (0) target = $region37
    $region36: #{facial_forward_train.1} parent=1 // pred_region
      _
    $region37: #{facial_forward_train.1} parent=1 // pred_fallthru
      _
    // Predicated region
    $region38: #{facial_forward_train.1} parent=1 // pred_check
      _
    $region39: #{facial_forward_train.1} parent=1 // pred_check_branch
      %46 = sbr.rel (0) target = $region41
    $region40: #{facial_forward_train.1} parent=1 // pred_region
      _
    $region41: #{facial_forward_train.1} parent=1 // pred_fallthru
      _
    // Predicated region
    $region42: #{facial_forward_train.1} parent=1 // pred_check
      _
    $region43: #{facial_forward_train.1} parent=1 // pred_check_branch
      %48 = sbr.rel (0) target = $region45
    $region44: #{facial_forward_train.1} parent=1 // pred_region
      _
    $region45: #{facial_forward_train.1} parent=1 // pred_fallthru
      _
    // Predicated region
    $region46: #{facial_forward_train.1} parent=1 // pred_check
      _
    $region47: #{facial_forward_train.1} parent=1 // pred_check_branch
      %50 = sbr.rel (0) target = $region49
    $region48: #{facial_forward_train.1} parent=1 // pred_region
      _
    $region49: #{facial_forward_train.1} parent=1 // pred_fallthru
      _
    // Predicated region
    $region50: #{facial_forward_train.1} parent=1 // pred_check
      _
    $region51: #{facial_forward_train.1} parent=1 // pred_check_branch
      %52 = sbr.rel (0) target = $region53
    $region52: #{facial_forward_train.1} parent=1 // pred_region
      _
    $region53: #{facial_forward_train.1} parent=1 // pred_fallthru
      _
    // Predicated region
    $region54: #{facial_forward_train.1} parent=1 // pred_check
      _
    $region55: #{facial_forward_train.1} parent=1 // pred_check_branch
      %54 = sbr.rel (0) target = $region57
    $region56: #{facial_forward_train.1} parent=1 // pred_region
      _
    $region57: #{facial_forward_train.1} parent=1 // pred_fallthru
      _
    %v56 = vld [vmem:[%s5] sm:$0xf]
    %v57 = vld [vmem:[%s5 + $0x4] sm:$0xf]
    %v58 = vld [vmem:[%s5 + $0x8] sm:$0xf]
    %v59 = vld [vmem:[%s5 + $0xc] sm:$0xf]
    %v60 = vld [vmem:[%s6] sm:$0x1]
    %v61 = vld [vmem:[%s7] sm:$0x1]
    %v62 = vld [vmem:[%s0] sm:$0xf]
    %v63 = vld [vmem:[%s0 + $0x4] sm:$0xf]
    %v64 = vld [vmem:[%s0 + $0x8] sm:$0xf]
    %v65 = vld [vmem:[%s0 + $0xc] sm:$0xf]
    %v66 = vld [vmem:[%s0 + $0x10] sm:$0xf]
    %v67 = vld [vmem:[%s0 + $0x14] sm:$0xf]
    %v68 = vld [vmem:[%s0 + $0x18] sm:$0xf]
    %v69 = vld [vmem:[%s0 + $0x1c] sm:$0xf]
    %v70 = vld [vmem:[%s0 + $0x20] sm:$0xf]
    %v71 = vld [vmem:[%s0 + $0x24] sm:$0xf]
    %v72 = vld [vmem:[%s0 + $0x28] sm:$0xf]
    %v73 = vld [vmem:[%s0 + $0x2c] sm:$0xf]
    %v74 = vld [vmem:[%s0 + $0x30] sm:$0xf]
    %v75 = vld [vmem:[%s0 + $0x34] sm:$0xf]
    %v76 = vld [vmem:[%s0 + $0x38] sm:$0xf]
    %v77 = vld [vmem:[%s0 + $0x3c] sm:$0xf]
    %v94 = vunpack.c.l.b16 %v62
    %v95 = vunpack.c.l.b16 %v63
    %v96 = vunpack.c.l.b16 %v64
    %v97 = vunpack.c.l.b16 %v65
    %v98 = vunpack.c.l.b16 %v66
    %v99 = vunpack.c.l.b16 %v67
    %v100 = vunpack.c.l.b16 %v68
    %v101 = vunpack.c.l.b16 %v69
    %v102 = vunpack.c.l.b16 %v70
    %v103 = vunpack.c.l.b16 %v71
    %v104 = vunpack.c.l.b16 %v72
    %v105 = vunpack.c.l.b16 %v73
    %v106 = vunpack.c.l.b16 %v74
    %v107 = vunpack.c.l.b16 %v75
    %v108 = vunpack.c.l.b16 %v76
    %v109 = vunpack.c.l.b16 %v77
    %v110 = vpack.c.b16 %v95, %v94
    %v111 = vpack.c.b16 %v97, %v96
    %v112 = vpack.c.b16 %v99, %v98
    %v113 = vpack.c.b16 %v101, %v100
    %v114 = vpack.c.b16 %v103, %v102
    %v115 = vpack.c.b16 %v105, %v104
    %v116 = vpack.c.b16 %v107, %v106
    %v117 = vpack.c.b16 %v109, %v108
    %v122 = vunpack.c.l.b16 %v56
    %v123 = vunpack.c.l.b16 %v57
    %v124 = vunpack.c.l.b16 %v58
    %v125 = vunpack.c.l.b16 %v59
    %v126 = vpack.c.b16 %v123, %v122
    %v127 = vpack.c.b16 %v125, %v124
    %vm130 = vcmask 261120
    %v132 = vsel %vm130, %v110, 0
    %v135 = vsel %vm130, %v111, 0
    %v138 = vsel %vm130, %v112, 0
    %v141 = vsel %vm130, %v113, 0
    %v144 = vsel %vm130, %v114, 0
    %v147 = vsel %vm130, %v115, 0
    %v150 = vsel %vm130, %v116, 0
    %v153 = vsel %vm130, %v117, 0
    %155 = vmatpush.bf16.msra.mxu0 0
    %156 = vmatpush.bf16.msra.mxu0 0
    %157 = vmatpush.bf16.msra.mxu0 0
    %158 = vmatpush.bf16.msra.mxu0 0
    %159 = vmatpush.bf16.msra.mxu0 0
    %160 = vmatpush.bf16.msra.mxu0 0
    %161 = vmatpush.bf16.msra.mxu0 %v127
    %162 = vmatpush.bf16.msra.mxu0 %v126
    %163 = vmatmul.bf16.gmra.mxu0 %v132
    %v164 = vpop.f32.mrf.mxu0
    %v165 = vadd.f32 0.0, %v164
    %v166 = vpop.f32.mrf.mxu0
    %v167 = vadd.f32 0.0, %v166
    %168 = vmatmul.bf16.gmra.mxu0 %v135
    %v169 = vpop.f32.mrf.mxu0
    %v170 = vadd.f32 0.0, %v169
    %v171 = vpop.f32.mrf.mxu0
    %v172 = vadd.f32 0.0, %v171
    %173 = vmatmul.bf16.gmra.mxu0 %v138
    %v174 = vpop.f32.mrf.mxu0
    %v175 = vadd.f32 0.0, %v174
    %v176 = vpop.f32.mrf.mxu0
    %v177 = vadd.f32 0.0, %v176
    %178 = vmatmul.bf16.gmra.mxu0 %v141
    %v179 = vpop.f32.mrf.mxu0
    %v180 = vadd.f32 0.0, %v179
    %v181 = vpop.f32.mrf.mxu0
    %v182 = vadd.f32 0.0, %v181
    %183 = vmatmul.bf16.gmra.mxu0 %v144
    %v184 = vpop.f32.mrf.mxu0
    %v185 = vadd.f32 0.0, %v184
    %v186 = vpop.f32.mrf.mxu0
    %v187 = vadd.f32 0.0, %v186
    %188 = vmatmul.bf16.gmra.mxu0 %v147
    %v189 = vpop.f32.mrf.mxu0
    %v190 = vadd.f32 0.0, %v189
    %v191 = vpop.f32.mrf.mxu0
    %v192 = vadd.f32 0.0, %v191
    %193 = vmatmul.bf16.gmra.mxu0 %v150
    %v194 = vpop.f32.mrf.mxu0
    %v195 = vadd.f32 0.0, %v194
    %v196 = vpop.f32.mrf.mxu0
    %v197 = vadd.f32 0.0, %v196
    %198 = vmatmul.bf16.gmra.mxu0 %v153
    %v199 = vpop.f32.mrf.mxu0
    %v200 = vadd.f32 0.0, %v199
    %v201 = vpop.f32.mrf.mxu0
    %v202 = vadd.f32 0.0, %v201
    %203 = vdwg.mxu0
    %v205 = vperm.slane %v60, 0
    %v207 = vmul.f32 %v165, %v205
    %v208 = vmul.f32 %v167, %v205
    %v209 = vmul.f32 %v170, %v205
    %v210 = vmul.f32 %v172, %v205
    %v211 = vmul.f32 %v175, %v205
    %v212 = vmul.f32 %v177, %v205
    %v213 = vmul.f32 %v180, %v205
    %v214 = vmul.f32 %v182, %v205
    %v215 = vmul.f32 %v185, %v205
    %v216 = vmul.f32 %v187, %v205
    %v217 = vmul.f32 %v190, %v205
    %v218 = vmul.f32 %v192, %v205
    %v219 = vmul.f32 %v195, %v205
    %v220 = vmul.f32 %v197, %v205
    %v221 = vmul.f32 %v200, %v205
    %v222 = vmul.f32 %v202, %v205
    %v224 = vperm.slane %v61, 0
    %v226 = vadd.f32 %v207, %v224
    %v227 = vadd.f32 %v208, %v224
    %v228 = vadd.f32 %v209, %v224
    %v229 = vadd.f32 %v210, %v224
    %v230 = vadd.f32 %v211, %v224
    %v231 = vadd.f32 %v212, %v224
    %v232 = vadd.f32 %v213, %v224
    %v233 = vadd.f32 %v214, %v224
    %v234 = vadd.f32 %v215, %v224
    %v235 = vadd.f32 %v216, %v224
    %v236 = vadd.f32 %v217, %v224
    %v237 = vadd.f32 %v218, %v224
    %v238 = vadd.f32 %v219, %v224
    %v239 = vadd.f32 %v220, %v224
    %v240 = vadd.f32 %v221, %v224
    %v241 = vadd.f32 %v222, %v224
    %v242 = vmax.f32 %v226, 0.0
    %v243 = vmax.f32 %v227, 0.0
    %v244 = vmax.f32 %v228, 0.0
    %v245 = vmax.f32 %v229, 0.0
    %v246 = vmax.f32 %v230, 0.0
    %v247 = vmax.f32 %v231, 0.0
    %v248 = vmax.f32 %v232, 0.0
    %v249 = vmax.f32 %v233, 0.0
    %v250 = vmax.f32 %v234, 0.0
    %v251 = vmax.f32 %v235, 0.0
    %v252 = vmax.f32 %v236, 0.0
    %v253 = vmax.f32 %v237, 0.0
    %v254 = vmax.f32 %v238, 0.0
    %v255 = vmax.f32 %v239, 0.0
    %v256 = vmax.f32 %v240, 0.0
    %v257 = vmax.f32 %v241, 0.0
    %v258 = vld [vmem:[%s1] sm:$0xf]
    %v259 = vld [vmem:[%s1 + $0x4] sm:$0xf]
    %v260 = vld [vmem:[%s1 + $0x8] sm:$0xf]
    %v261 = vld [vmem:[%s1 + $0xc] sm:$0xf]
    %v262 = vld [vmem:[%s1 + $0x10] sm:$0xf]
    %v263 = vld [vmem:[%s1 + $0x14] sm:$0xf]
    %v264 = vld [vmem:[%s1 + $0x18] sm:$0xf]
    %v265 = vld [vmem:[%s1 + $0x1c] sm:$0xf]
    %v266 = vld [vmem:[%s1 + $0x20] sm:$0xf]
    %v267 = vld [vmem:[%s1 + $0x24] sm:$0xf]
    %v268 = vld [vmem:[%s1 + $0x28] sm:$0xf]
    %v269 = vld [vmem:[%s1 + $0x2c] sm:$0xf]
    %v270 = vld [vmem:[%s1 + $0x30] sm:$0xf]
    %v271 = vld [vmem:[%s1 + $0x34] sm:$0xf]
    %v272 = vld [vmem:[%s1 + $0x38] sm:$0xf]
    %v273 = vld [vmem:[%s1 + $0x3c] sm:$0xf]
    %v274 = vunpack.c.l.bf16 %v258
    %v275 = vunpack.c.l.bf16 %v259
    %v276 = vunpack.c.l.bf16 %v260
    %v277 = vunpack.c.l.bf16 %v261
    %v278 = vunpack.c.l.bf16 %v262
    %v279 = vunpack.c.l.bf16 %v263
    %v280 = vunpack.c.l.bf16 %v264
    %v281 = vunpack.c.l.bf16 %v265
    %v282 = vunpack.c.l.bf16 %v266
    %v283 = vunpack.c.l.bf16 %v267
    %v284 = vunpack.c.l.bf16 %v268
    %v285 = vunpack.c.l.bf16 %v269
    %v286 = vunpack.c.l.bf16 %v270
    %v287 = vunpack.c.l.bf16 %v271
    %v288 = vunpack.c.l.bf16 %v272
    %v289 = vunpack.c.l.bf16 %v273
    %v290 = vld [vmem:[%s13] sm:$0x1]
    %v292 = vperm.slane %v290, 0
    %v294 = vmul.f32 %v242, %v292
    %v295 = vmul.f32 %v243, %v292
    %v296 = vmul.f32 %v244, %v292
    %v297 = vmul.f32 %v245, %v292
    %v298 = vmul.f32 %v246, %v292
    %v299 = vmul.f32 %v247, %v292
    %v300 = vmul.f32 %v248, %v292
    %v301 = vmul.f32 %v249, %v292
    %v302 = vmul.f32 %v250, %v292
    %v303 = vmul.f32 %v251, %v292
    %v304 = vmul.f32 %v252, %v292
    %v305 = vmul.f32 %v253, %v292
    %v306 = vmul.f32 %v254, %v292
    %v307 = vmul.f32 %v255, %v292
    %v308 = vmul.f32 %v256, %v292
    %v309 = vmul.f32 %v257, %v292
    %v310 = vmul.f32 %v274, %v292
    %v311 = vmul.f32 %v275, %v292
    %v312 = vmul.f32 %v276, %v292
    %v313 = vmul.f32 %v277, %v292
    %v314 = vmul.f32 %v278, %v292
    %v315 = vmul.f32 %v279, %v292
    %v316 = vmul.f32 %v280, %v292
    %v317 = vmul.f32 %v281, %v292
    %v318 = vmul.f32 %v282, %v292
    %v319 = vmul.f32 %v283, %v292
    %v320 = vmul.f32 %v284, %v292
    %v321 = vmul.f32 %v285, %v292
    %v322 = vmul.f32 %v286, %v292
    %v323 = vmul.f32 %v287, %v292
    %v324 = vmul.f32 %v288, %v292
    %v325 = vmul.f32 %v289, %v292
    %v326 = vsel %vm130, %v294, 0.0
    %327 = vadd.xlane.f32.xlu0 %v326
    %v328 = vpop.xlane.xlu0 %327
    %v329 = vsel %vm130, %v295, 0.0
    %330 = vadd.xlane.f32.xlu0 %v329
    %v331 = vpop.xlane.xlu0 %330
    %v332 = vsel %vm130, %v296, 0.0
    %333 = vadd.xlane.f32.xlu0 %v332
    %v334 = vpop.xlane.xlu0 %333
    %v335 = vsel %vm130, %v297, 0.0
    %336 = vadd.xlane.f32.xlu0 %v335
    %v337 = vpop.xlane.xlu0 %336
    %v338 = vsel %vm130, %v298, 0.0
    %339 = vadd.xlane.f32.xlu0 %v338
    %v340 = vpop.xlane.xlu0 %339
    %v341 = vsel %vm130, %v299, 0.0
    %342 = vadd.xlane.f32.xlu0 %v341
    %v343 = vpop.xlane.xlu0 %342
    %v344 = vsel %vm130, %v300, 0.0
    %345 = vadd.xlane.f32.xlu0 %v344
    %v346 = vpop.xlane.xlu0 %345
    %v347 = vsel %vm130, %v301, 0.0
    %348 = vadd.xlane.f32.xlu0 %v347
    %v349 = vpop.xlane.xlu0 %348
    %v350 = vsel %vm130, %v302, 0.0
    %351 = vadd.xlane.f32.xlu0 %v350
    %v352 = vpop.xlane.xlu0 %351
    %v353 = vsel %vm130, %v303, 0.0
    %354 = vadd.xlane.f32.xlu0 %v353
    %v355 = vpop.xlane.xlu0 %354
    %v356 = vsel %vm130, %v304, 0.0
    %357 = vadd.xlane.f32.xlu0 %v356
    %v358 = vpop.xlane.xlu0 %357
    %v359 = vsel %vm130, %v305, 0.0
    %360 = vadd.xlane.f32.xlu0 %v359
    %v361 = vpop.xlane.xlu0 %360
    %v362 = vsel %vm130, %v306, 0.0
    %363 = vadd.xlane.f32.xlu0 %v362
    %v364 = vpop.xlane.xlu0 %363
    %v365 = vsel %vm130, %v307, 0.0
    %366 = vadd.xlane.f32.xlu0 %v365
    %v367 = vpop.xlane.xlu0 %366
    %v368 = vsel %vm130, %v308, 0.0
    %369 = vadd.xlane.f32.xlu0 %v368
    %v370 = vpop.xlane.xlu0 %369
    %v371 = vsel %vm130, %v309, 0.0
    %372 = vadd.xlane.f32.xlu0 %v371
    %v373 = vpop.xlane.xlu0 %372
    %v374 = vsel %vm130, %v310, 0.0
    %375 = vadd.xlane.f32.xlu0 %v374
    %v376 = vpop.xlane.xlu0 %375
    %v377 = vsel %vm130, %v311, 0.0
    %378 = vadd.xlane.f32.xlu0 %v377
    %v379 = vpop.xlane.xlu0 %378
    %v380 = vsel %vm130, %v312, 0.0
    %381 = vadd.xlane.f32.xlu0 %v380
    %v382 = vpop.xlane.xlu0 %381
    %v383 = vsel %vm130, %v313, 0.0
    %384 = vadd.xlane.f32.xlu0 %v383
    %v385 = vpop.xlane.xlu0 %384
    %v386 = vsel %vm130, %v314, 0.0
    %387 = vadd.xlane.f32.xlu0 %v386
    %v388 = vpop.xlane.xlu0 %387
    %v389 = vsel %vm130, %v315, 0.0
    %390 = vadd.xlane.f32.xlu0 %v389
    %v391 = vpop.xlane.xlu0 %390
    %v392 = vsel %vm130, %v316, 0.0
    %393 = vadd.xlane.f32.xlu0 %v392
    %v394 = vpop.xlane.xlu0 %393
    %v395 = vsel %vm130, %v317, 0.0
    %396 = vadd.xlane.f32.xlu0 %v395
    %v397 = vpop.xlane.xlu0 %396
    %v398 = vsel %vm130, %v318, 0.0
    %399 = vadd.xlane.f32.xlu0 %v398
    %v400 = vpop.xlane.xlu0 %399
    %v401 = vsel %vm130, %v319, 0.0
    %402 = vadd.xlane.f32.xlu0 %v401
    %v403 = vpop.xlane.xlu0 %402
    %v404 = vsel %vm130, %v320, 0.0
    %405 = vadd.xlane.f32.xlu0 %v404
    %v406 = vpop.xlane.xlu0 %405
    %v407 = vsel %vm130, %v321, 0.0
    %408 = vadd.xlane.f32.xlu0 %v407
    %v409 = vpop.xlane.xlu0 %408
    %v410 = vsel %vm130, %v322, 0.0
    %411 = vadd.xlane.f32.xlu0 %v410
    %v412 = vpop.xlane.xlu0 %411
    %v413 = vsel %vm130, %v323, 0.0
    %414 = vadd.xlane.f32.xlu0 %v413
    %v415 = vpop.xlane.xlu0 %414
    %v416 = vsel %vm130, %v324, 0.0
    %417 = vadd.xlane.f32.xlu0 %v416
    %v418 = vpop.xlane.xlu0 %417
    %v419 = vsel %vm130, %v325, 0.0
    %420 = vadd.xlane.f32.xlu0 %v419
    %v421 = vpop.xlane.xlu0 %420
    %v454 = vlaneseq
    %v455 = vand.u32 %v454, 127
    %v456 = vperm.slane %v328, %v455
    %v457 = vadd.s32 %v455, 4294967288
    %v458 = vperm.slane %v331, %v457
    %vm459 = vcmask 130112
    %v460 = vsel %vm459, %v458, %v456
    %v461 = vadd.s32 %v455, 4294967280
    %v462 = vperm.slane %v334, %v461
    %vm463 = vcmask 195712
    %v464 = vsel %vm463, %v462, %v460
    %v465 = vadd.s32 %v455, 4294967272
    %v466 = vperm.slane %v337, %v465
    %vm467 = vcmask 261312
    %v468 = vsel %vm467, %v466, %v464
    %v469 = vadd.s32 %v455, 4294967264
    %v470 = vperm.slane %v340, %v469
    %vm471 = vcmask 326912
    %v472 = vsel %vm471, %v470, %v468
    %v473 = vadd.s32 %v455, 4294967256
    %v474 = vperm.slane %v343, %v473
    %vm475 = vcmask 392512
    %v476 = vsel %vm475, %v474, %v472
    %v477 = vadd.s32 %v455, 4294967248
    %v478 = vperm.slane %v346, %v477
    %vm479 = vcmask 458112
    %v480 = vsel %vm479, %v478, %v476
    %v481 = vadd.s32 %v455, 4294967240
    %v482 = vperm.slane %v349, %v481
    %vm483 = vcmask 523712
    %v484 = vsel %vm483, %v482, %v480
    %v485 = vperm.slane %v352, %v455
    %v486 = vperm.slane %v355, %v457
    %v487 = vsel %vm459, %v486, %v485
    %v488 = vperm.slane %v358, %v461
    %v489 = vsel %vm463, %v488, %v487
    %v490 = vperm.slane %v361, %v465
    %v491 = vsel %vm467, %v490, %v489
    %v492 = vperm.slane %v364, %v469
    %v493 = vsel %vm471, %v492, %v491
    %v494 = vperm.slane %v367, %v473
    %v495 = vsel %vm475, %v494, %v493
    %v496 = vperm.slane %v370, %v477
    %v497 = vsel %vm479, %v496, %v495
    %v498 = vperm.slane %v373, %v481
    %v499 = vsel %vm483, %v498, %v497
    %v500 = vperm.slane %v376, %v455
    %v501 = vperm.slane %v379, %v457
    %v502 = vsel %vm459, %v501, %v500
    %v503 = vperm.slane %v382, %v461
    %v504 = vsel %vm463, %v503, %v502
    %v505 = vperm.slane %v385, %v465
    %v506 = vsel %vm467, %v505, %v504
    %v507 = vperm.slane %v388, %v469
    %v508 = vsel %vm471, %v507, %v506
    %v509 = vperm.slane %v391, %v473
    %v510 = vsel %vm475, %v509, %v508
    %v511 = vperm.slane %v394, %v477
    %v512 = vsel %vm479, %v511, %v510
    %v513 = vperm.slane %v397, %v481
    %v514 = vsel %vm483, %v513, %v512
    %v515 = vperm.slane %v400, %v455
    %v516 = vperm.slane %v403, %v457
    %v517 = vsel %vm459, %v516, %v515
    %v518 = vperm.slane %v406, %v461
    %v519 = vsel %vm463, %v518, %v517
    %v520 = vperm.slane %v409, %v465
    %v521 = vsel %vm467, %v520, %v519
    %v522 = vperm.slane %v412, %v469
    %v523 = vsel %vm471, %v522, %v521
    %v524 = vperm.slane %v415, %v473
    %v525 = vsel %vm475, %v524, %v523
    %v526 = vperm.slane %v418, %v477
    %v527 = vsel %vm479, %v526, %v525
    %v528 = vperm.slane %v421, %v481
    %v529 = vsel %vm483, %v528, %v527
    %vm530 = vcmask 1041409
    %v531 = vsel %vm530, %v499, %v484
    %vm532 = vcmask 1042434
    %v533 = vsel %vm532, %v514, %v531
    %vm534 = vcmask 1043459
    %v535 = vsel %vm534, %v529, %v533
    %vm537 = vcmask 519168
    %538 = vst.msk [vmem:[%s14] sm:$0xf] %vm537, %v535
    %v539 = vsel %vm130, %v242, 0.0
    %v540 = vsel %vm130, %v243, 0.0
    %v541 = vadd.f32 %v539, %v540
    %v542 = vsel %vm130, %v244, 0.0
    %v543 = vadd.f32 %v541, %v542
    %v544 = vsel %vm130, %v245, 0.0
    %v545 = vadd.f32 %v543, %v544
    %v546 = vsel %vm130, %v246, 0.0
    %v547 = vadd.f32 %v545, %v546
    %v548 = vsel %vm130, %v247, 0.0
    %v549 = vadd.f32 %v547, %v548
    %v550 = vsel %vm130, %v248, 0.0
    %v551 = vadd.f32 %v549, %v550
    %v552 = vsel %vm130, %v249, 0.0
    %v553 = vadd.f32 %v551, %v552
    %v554 = vrot.slane %v553, 4
    %v555 = vadd.f32 %v553, %v554
    %v556 = vrot.slane %v555, 2
    %v557 = vadd.f32 %v555, %v556
    %v558 = vrot.slane %v557, 1
    %v559 = vadd.f32 %v557, %v558
    %v560 = vsel %vm130, %v250, 0.0
    %v561 = vsel %vm130, %v251, 0.0
    %v562 = vadd.f32 %v560, %v561
    %v563 = vsel %vm130, %v252, 0.0
    %v564 = vadd.f32 %v562, %v563
    %v565 = vsel %vm130, %v253, 0.0
    %v566 = vadd.f32 %v564, %v565
    %v567 = vsel %vm130, %v254, 0.0
    %v568 = vadd.f32 %v566, %v567
    %v569 = vsel %vm130, %v255, 0.0
    %v570 = vadd.f32 %v568, %v569
    %v571 = vsel %vm130, %v256, 0.0
    %v572 = vadd.f32 %v570, %v571
    %v573 = vsel %vm130, %v257, 0.0
    %v574 = vadd.f32 %v572, %v573
    %v575 = vrot.slane %v574, 4
    %v576 = vadd.f32 %v574, %v575
    %v577 = vrot.slane %v576, 2
    %v578 = vadd.f32 %v576, %v577
    %v579 = vrot.slane %v578, 1
    %v580 = vadd.f32 %v578, %v579
    %v581 = vrcp.pop 64.0
    %v582 = vmul.f32 64.0, %v581
    %v583 = vsub.f32 1.0, %v582
    %v584 = vmul.f32 %v581, %v583
    %v585 = vadd.f32 %v581, %v584
    %vm586 = vweird.f32 %v581
    %v587 = vsel %vm586, %v581, %v585
    %v588 = vmul.f32 %v559, %v587
    %v589 = vmul.f32 %v580, %v587
    %v590 = vld [vmem:[%s10] sm:$0x1]
    %v591 = vld [vmem:[%s11] sm:$0x1]
    %v592 = vld [vmem:[%s3] sm:$0xf]
    %v593 = vld [vmem:[%s3 + $0x4] sm:$0xf]
    %v594 = vld [vmem:[%s3 + $0x8] sm:$0xf]
    %v595 = vld [vmem:[%s3 + $0xc] sm:$0xf]
    %v600 = vunpack.c.l.b16 %v592
    %v601 = vunpack.c.l.b16 %v593
    %v602 = vunpack.c.l.b16 %v594
    %v603 = vunpack.c.l.b16 %v595
    %v604 = vpack.c.b16 %v601, %v600
    %v605 = vpack.c.b16 %v603, %v602
    %v607 = vsel %vm130, %v604, 0
    %v610 = vsel %vm130, %v605, 0
    %612 = vmatpush.bf16.msra.mxu0 0
    %613 = vmatpush.bf16.msra.mxu0 0
    %614 = vmatpush.bf16.msra.mxu0 0
    %615 = vmatpush.bf16.msra.mxu0 0
    %616 = vmatpush.bf16.msra.mxu0 0
    %617 = vmatpush.bf16.msra.mxu0 0
    %618 = vmatpush.bf16.msra.mxu0 %v127
    %619 = vmatpush.bf16.msra.mxu0 %v126
    %620 = vmatmul.bf16.gmra.mxu0 %v607
    %v621 = vpop.f32.mrf.mxu0
    %v622 = vadd.f32 0.0, %v621
    %v623 = vpop.f32.mrf.mxu0
    %v624 = vadd.f32 0.0, %v623
    %625 = vmatmul.bf16.gmra.mxu0 %v610
    %v626 = vpop.f32.mrf.mxu0
    %v627 = vadd.f32 0.0, %v626
    %v628 = vpop.f32.mrf.mxu0
    %v629 = vadd.f32 0.0, %v628
    %630 = vdwg.mxu0
    %v631 = vmul.f32 %v622, %v205
    %v632 = vmul.f32 %v624, %v205
    %v633 = vmul.f32 %v627, %v205
    %v634 = vmul.f32 %v629, %v205
    %v635 = vadd.f32 %v631, %v224
    %v636 = vadd.f32 %v632, %v224
    %v637 = vadd.f32 %v633, %v224
    %v638 = vadd.f32 %v634, %v224
    %v639 = vmax.f32 %v635, 0.0
    %v640 = vmax.f32 %v636, 0.0
    %v641 = vmax.f32 %v637, 0.0
    %v642 = vmax.f32 %v638, 0.0
    %v643 = vld [vmem:[%s8] sm:$0xf]
    %v644 = vld [vmem:[%s8 + $0x4] sm:$0xf]
    %v645 = vld [vmem:[%s8 + $0x8] sm:$0xf]
    %v646 = vld [vmem:[%s8 + $0xc] sm:$0xf]
    %v647 = vpack.c.bf16 %v640, %v639
    %v648 = vpack.c.bf16 %v642, %v641
    %v649 = vld [vmem:[%s9] sm:$0xf]
    %v650 = vld [vmem:[%s9 + $0x4] sm:$0xf]
    %v651 = vld [vmem:[%s9 + $0x8] sm:$0xf]
    %v652 = vld [vmem:[%s9 + $0xc] sm:$0xf]
    %v657 = vunpack.c.l.b16 %v649
    %v658 = vunpack.c.l.b16 %v650
    %v659 = vunpack.c.l.b16 %v651
    %v660 = vunpack.c.l.b16 %v652
    %v661 = vpack.c.b16 %v658, %v657
    %v662 = vpack.c.b16 %v660, %v659
    %v666 = vsel %vm130, %v647, 0
    %v669 = vsel %vm130, %v648, 0
    %671 = vmatpush.bf16.msra.mxu0 0
    %672 = vmatpush.bf16.msra.mxu0 0
    %673 = vmatpush.bf16.msra.mxu0 0
    %674 = vmatpush.bf16.msra.mxu0 0
    %675 = vmatpush.bf16.msra.mxu0 0
    %676 = vmatpush.bf16.msra.mxu0 0
    %677 = vmatpush.bf16.msra.mxu0 %v662
    %678 = vmatpush.bf16.msra.mxu0 %v661
    %679 = vmatmul.bf16.gmra.mxu0 %v666
    %v680 = vpop.f32.mrf.mxu0
    %v681 = vadd.f32 0.0, %v680
    %v682 = vpop.f32.mrf.mxu0
    %v683 = vadd.f32 0.0, %v682
    %684 = vmatmul.bf16.gmra.mxu0 %v669
    %v685 = vpop.f32.mrf.mxu0
    %v686 = vadd.f32 0.0, %v685
    %v687 = vpop.f32.mrf.mxu0
    %v688 = vadd.f32 0.0, %v687
    %689 = vdwg.mxu0
    %v694 = vunpack.c.l.b16 %v643
    %v695 = vunpack.c.l.b16 %v644
    %v696 = vunpack.c.l.b16 %v645
    %v697 = vunpack.c.l.b16 %v646
    %v698 = vpack.c.b16 %v695, %v694
    %v699 = vpack.c.b16 %v697, %v696
    %702 = vmatpush.bf16.msra.mxu0 0
    %703 = vmatpush.bf16.msra.mxu0 0
    %704 = vmatpush.bf16.msra.mxu0 0
    %705 = vmatpush.bf16.msra.mxu0 0
    %706 = vmatpush.bf16.msra.mxu0 0
    %707 = vmatpush.bf16.msra.mxu0 0
    %708 = vmatpush.bf16.msra.mxu0 %v699
    %709 = vmatpush.bf16.msra.mxu0 %v698
    %710 = vmatmul.bf16.gmra.mxu0 %v607
    %v711 = vpop.f32.mrf.mxu0
    %v712 = vadd.f32 %v681, %v711
    %v713 = vpop.f32.mrf.mxu0
    %v714 = vadd.f32 %v683, %v713
    %715 = vmatmul.bf16.gmra.mxu0 %v610
    %v716 = vpop.f32.mrf.mxu0
    %v717 = vadd.f32 %v686, %v716
    %v718 = vpop.f32.mrf.mxu0
    %v719 = vadd.f32 %v688, %v718
    %720 = vdwg.mxu0
    %s721 = scalar_lea.vmem %s3, 16
    %v722 = vld [vmem:[%s721] sm:$0xf]
    %v723 = vld [vmem:[%s721 + $0x4] sm:$0xf]
    %v724 = vld [vmem:[%s721 + $0x8] sm:$0xf]
    %v725 = vld [vmem:[%s721 + $0xc] sm:$0xf]
    %v730 = vunpack.c.l.b16 %v722
    %v731 = vunpack.c.l.b16 %v723
    %v732 = vunpack.c.l.b16 %v724
    %v733 = vunpack.c.l.b16 %v725
    %v734 = vpack.c.b16 %v731, %v730
    %v735 = vpack.c.b16 %v733, %v732
    %v737 = vsel %vm130, %v734, 0
    %v740 = vsel %vm130, %v735, 0
    %742 = vmatpush.bf16.msra.mxu0 0
    %743 = vmatpush.bf16.msra.mxu0 0
    %744 = vmatpush.bf16.msra.mxu0 0
    %745 = vmatpush.bf16.msra.mxu0 0
    %746 = vmatpush.bf16.msra.mxu0 0
    %747 = vmatpush.bf16.msra.mxu0 0
    %748 = vmatpush.bf16.msra.mxu0 %v127
    %749 = vmatpush.bf16.msra.mxu0 %v126
    %750 = vmatmul.bf16.gmra.mxu0 %v737
    %v751 = vpop.f32.mrf.mxu0
    %v752 = vadd.f32 0.0, %v751
    %v753 = vpop.f32.mrf.mxu0
    %v754 = vadd.f32 0.0, %v753
    %755 = vmatmul.bf16.gmra.mxu0 %v740
    %v756 = vpop.f32.mrf.mxu0
    %v757 = vadd.f32 0.0, %v756
    %v758 = vpop.f32.mrf.mxu0
    %v759 = vadd.f32 0.0, %v758
    %760 = vdwg.mxu0
    %v761 = vmul.f32 %v752, %v205
    %v762 = vmul.f32 %v754, %v205
    %v763 = vmul.f32 %v757, %v205
    %v764 = vmul.f32 %v759, %v205
    %v765 = vadd.f32 %v761, %v224
    %v766 = vadd.f32 %v762, %v224
    %v767 = vadd.f32 %v763, %v224
    %v768 = vadd.f32 %v764, %v224
    %v769 = vmax.f32 %v765, 0.0
    %v770 = vmax.f32 %v766, 0.0
    %v771 = vmax.f32 %v767, 0.0
    %v772 = vmax.f32 %v768, 0.0
    %s773 = scalar_lea.vmem %s8, 16
    %v774 = vld [vmem:[%s773] sm:$0xf]
    %v775 = vld [vmem:[%s773 + $0x4] sm:$0xf]
    %v776 = vld [vmem:[%s773 + $0x8] sm:$0xf]
    %v777 = vld [vmem:[%s773 + $0xc] sm:$0xf]
    %v782 = vunpack.c.l.b16 %v774
    %v783 = vunpack.c.l.b16 %v775
    %v784 = vunpack.c.l.b16 %v776
    %v785 = vunpack.c.l.b16 %v777
    %v786 = vpack.c.b16 %v783, %v782
    %v787 = vpack.c.b16 %v785, %v784
    %790 = vmatpush.bf16.msra.mxu0 0
    %791 = vmatpush.bf16.msra.mxu0 0
    %792 = vmatpush.bf16.msra.mxu0 0
    %793 = vmatpush.bf16.msra.mxu0 0
    %794 = vmatpush.bf16.msra.mxu0 0
    %795 = vmatpush.bf16.msra.mxu0 0
    %796 = vmatpush.bf16.msra.mxu0 %v787
    %797 = vmatpush.bf16.msra.mxu0 %v786
    %798 = vmatmul.bf16.gmra.mxu0 %v737
    %v799 = vpop.f32.mrf.mxu0
    %v800 = vadd.f32 0.0, %v799
    %v801 = vpop.f32.mrf.mxu0
    %v802 = vadd.f32 0.0, %v801
    %803 = vmatmul.bf16.gmra.mxu0 %v740
    %v804 = vpop.f32.mrf.mxu0
    %v805 = vadd.f32 0.0, %v804
    %v806 = vpop.f32.mrf.mxu0
    %v807 = vadd.f32 0.0, %v806
    %808 = vdwg.mxu0
    %v809 = vadd.f32 %v712, %v800
    %v810 = vadd.f32 %v714, %v802
    %v811 = vadd.f32 %v717, %v805
    %v812 = vadd.f32 %v719, %v807
    %v813 = vpack.c.bf16 %v770, %v769
    %v814 = vpack.c.bf16 %v772, %v771
    %s815 = scalar_lea.vmem %s9, 16
    %v816 = vld [vmem:[%s815] sm:$0xf]
    %v817 = vld [vmem:[%s815 + $0x4] sm:$0xf]
    %v818 = vld [vmem:[%s815 + $0x8] sm:$0xf]
    %v819 = vld [vmem:[%s815 + $0xc] sm:$0xf]
    %v824 = vunpack.c.l.b16 %v816
    %v825 = vunpack.c.l.b16 %v817
    %v826 = vunpack.c.l.b16 %v818
    %v827 = vunpack.c.l.b16 %v819
    %v828 = vpack.c.b16 %v825, %v824
    %v829 = vpack.c.b16 %v827, %v826
    %v833 = vsel %vm130, %v813, 0
    %v836 = vsel %vm130, %v814, 0
    %838 = vmatpush.bf16.msra.mxu0 0
    %839 = vmatpush.bf16.msra.mxu0 0
    %840 = vmatpush.bf16.msra.mxu0 0
    %841 = vmatpush.bf16.msra.mxu0 0
    %842 = vmatpush.bf16.msra.mxu0 0
    %843 = vmatpush.bf16.msra.mxu0 0
    %844 = vmatpush.bf16.msra.mxu0 %v829
    %845 = vmatpush.bf16.msra.mxu0 %v828
    %846 = vmatmul.bf16.gmra.mxu0 %v833
    %v847 = vpop.f32.mrf.mxu0
    %v848 = vadd.f32 0.0, %v847
    %v849 = vpop.f32.mrf.mxu0
    %v850 = vadd.f32 0.0, %v849
    %851 = vmatmul.bf16.gmra.mxu0 %v836
    %v852 = vpop.f32.mrf.mxu0
    %v853 = vadd.f32 0.0, %v852
    %v854 = vpop.f32.mrf.mxu0
    %v855 = vadd.f32 0.0, %v854
    %856 = vdwg.mxu0
    %v857 = vadd.f32 %v809, %v848
    %v858 = vadd.f32 %v810, %v850
    %v859 = vadd.f32 %v811, %v853
    %v860 = vadd.f32 %v812, %v855
    %s861 = scalar_lea.vmem %s3, 32
    %v862 = vld [vmem:[%s861] sm:$0xf]
    %v863 = vld [vmem:[%s861 + $0x4] sm:$0xf]
    %v864 = vld [vmem:[%s861 + $0x8] sm:$0xf]
    %v865 = vld [vmem:[%s861 + $0xc] sm:$0xf]
    %v870 = vunpack.c.l.b16 %v862
    %v871 = vunpack.c.l.b16 %v863
    %v872 = vunpack.c.l.b16 %v864
    %v873 = vunpack.c.l.b16 %v865
    %v874 = vpack.c.b16 %v871, %v870
    %v875 = vpack.c.b16 %v873, %v872
    %v877 = vsel %vm130, %v874, 0
    %v880 = vsel %vm130, %v875, 0
    %882 = vmatpush.bf16.msra.mxu0 0
    %883 = vmatpush.bf16.msra.mxu0 0
    %884 = vmatpush.bf16.msra.mxu0 0
    %885 = vmatpush.bf16.msra.mxu0 0
    %886 = vmatpush.bf16.msra.mxu0 0
    %887 = vmatpush.bf16.msra.mxu0 0
    %888 = vmatpush.bf16.msra.mxu0 %v127
    %889 = vmatpush.bf16.msra.mxu0 %v126
    %890 = vmatmul.bf16.gmra.mxu0 %v877
    %v891 = vpop.f32.mrf.mxu0
    %v892 = vadd.f32 0.0, %v891
    %v893 = vpop.f32.mrf.mxu0
    %v894 = vadd.f32 0.0, %v893
    %895 = vmatmul.bf16.gmra.mxu0 %v880
    %v896 = vpop.f32.mrf.mxu0
    %v897 = vadd.f32 0.0, %v896
    %v898 = vpop.f32.mrf.mxu0
    %v899 = vadd.f32 0.0, %v898
    %900 = vdwg.mxu0
    %v901 = vmul.f32 %v892, %v205
    %v902 = vmul.f32 %v894, %v205
    %v903 = vmul.f32 %v897, %v205
    %v904 = vmul.f32 %v899, %v205
    %v905 = vadd.f32 %v901, %v224
    %v906 = vadd.f32 %v902, %v224
    %v907 = vadd.f32 %v903, %v224
    %v908 = vadd.f32 %v904, %v224
    %v909 = vmax.f32 %v905, 0.0
    %v910 = vmax.f32 %v906, 0.0
    %v911 = vmax.f32 %v907, 0.0
    %v912 = vmax.f32 %v908, 0.0
    %s913 = scalar_lea.vmem %s8, 32
    %v914 = vld [vmem:[%s913] sm:$0xf]
    %v915 = vld [vmem:[%s913 + $0x4] sm:$0xf]
    %v916 = vld [vmem:[%s913 + $0x8] sm:$0xf]
    %v917 = vld [vmem:[%s913 + $0xc] sm:$0xf]
    %v922 = vunpack.c.l.b16 %v914
    %v923 = vunpack.c.l.b16 %v915
    %v924 = vunpack.c.l.b16 %v916
    %v925 = vunpack.c.l.b16 %v917
    %v926 = vpack.c.b16 %v923, %v922
    %v927 = vpack.c.b16 %v925, %v924
    %930 = vmatpush.bf16.msra.mxu0 0
    %931 = vmatpush.bf16.msra.mxu0 0
    %932 = vmatpush.bf16.msra.mxu0 0
    %933 = vmatpush.bf16.msra.mxu0 0
    %934 = vmatpush.bf16.msra.mxu0 0
    %935 = vmatpush.bf16.msra.mxu0 0
    %936 = vmatpush.bf16.msra.mxu0 %v927
    %937 = vmatpush.bf16.msra.mxu0 %v926
    %938 = vmatmul.bf16.gmra.mxu0 %v877
    %v939 = vpop.f32.mrf.mxu0
    %v940 = vadd.f32 0.0, %v939
    %v941 = vpop.f32.mrf.mxu0
    %v942 = vadd.f32 0.0, %v941
    %943 = vmatmul.bf16.gmra.mxu0 %v880
    %v944 = vpop.f32.mrf.mxu0
    %v945 = vadd.f32 0.0, %v944
    %v946 = vpop.f32.mrf.mxu0
    %v947 = vadd.f32 0.0, %v946
    %948 = vdwg.mxu0
    %v949 = vadd.f32 %v857, %v940
    %v950 = vadd.f32 %v858, %v942
    %v951 = vadd.f32 %v859, %v945
    %v952 = vadd.f32 %v860, %v947
    %v953 = vpack.c.bf16 %v910, %v909
    %v954 = vpack.c.bf16 %v912, %v911
    %s955 = scalar_lea.vmem %s9, 32
    %v956 = vld [vmem:[%s955] sm:$0xf]
    %v957 = vld [vmem:[%s955 + $0x4] sm:$0xf]
    %v958 = vld [vmem:[%s955 + $0x8] sm:$0xf]
    %v959 = vld [vmem:[%s955 + $0xc] sm:$0xf]
    %v964 = vunpack.c.l.b16 %v956
    %v965 = vunpack.c.l.b16 %v957
    %v966 = vunpack.c.l.b16 %v958
    %v967 = vunpack.c.l.b16 %v959
    %v968 = vpack.c.b16 %v965, %v964
    %v969 = vpack.c.b16 %v967, %v966
    %v973 = vsel %vm130, %v953, 0
    %v976 = vsel %vm130, %v954, 0
    %978 = vmatpush.bf16.msra.mxu0 0
    %979 = vmatpush.bf16.msra.mxu0 0
    %980 = vmatpush.bf16.msra.mxu0 0
    %981 = vmatpush.bf16.msra.mxu0 0
    %982 = vmatpush.bf16.msra.mxu0 0
    %983 = vmatpush.bf16.msra.mxu0 0
    %984 = vmatpush.bf16.msra.mxu0 %v969
    %985 = vmatpush.bf16.msra.mxu0 %v968
    %986 = vmatmul.bf16.gmra.mxu0 %v973
    %v987 = vpop.f32.mrf.mxu0
    %v988 = vadd.f32 0.0, %v987
    %v989 = vpop.f32.mrf.mxu0
    %v990 = vadd.f32 0.0, %v989
    %991 = vmatmul.bf16.gmra.mxu0 %v976
    %v992 = vpop.f32.mrf.mxu0
    %v993 = vadd.f32 0.0, %v992
    %v994 = vpop.f32.mrf.mxu0
    %v995 = vadd.f32 0.0, %v994
    %996 = vdwg.mxu0
    %v997 = vadd.f32 %v949, %v988
    %v998 = vadd.f32 %v950, %v990
    %v999 = vadd.f32 %v951, %v993
    %v1000 = vadd.f32 %v952, %v995
    %s1001 = scalar_lea.vmem %s3, 48
    %v1002 = vld [vmem:[%s1001] sm:$0xf]
    %v1003 = vld [vmem:[%s1001 + $0x4] sm:$0xf]
    %v1004 = vld [vmem:[%s1001 + $0x8] sm:$0xf]
    %v1005 = vld [vmem:[%s1001 + $0xc] sm:$0xf]
    %v1010 = vunpack.c.l.b16 %v1002
    %v1011 = vunpack.c.l.b16 %v1003
    %v1012 = vunpack.c.l.b16 %v1004
    %v1013 = vunpack.c.l.b16 %v1005
    %v1014 = vpack.c.b16 %v1011, %v1010
    %v1015 = vpack.c.b16 %v1013, %v1012
    %v1017 = vsel %vm130, %v1014, 0
    %v1020 = vsel %vm130, %v1015, 0
    %1022 = vmatpush.bf16.msra.mxu0 0
    %1023 = vmatpush.bf16.msra.mxu0 0
    %1024 = vmatpush.bf16.msra.mxu0 0
    %1025 = vmatpush.bf16.msra.mxu0 0
    %1026 = vmatpush.bf16.msra.mxu0 0
    %1027 = vmatpush.bf16.msra.mxu0 0
    %1028 = vmatpush.bf16.msra.mxu0 %v127
    %1029 = vmatpush.bf16.msra.mxu0 %v126
    %1030 = vmatmul.bf16.gmra.mxu0 %v1017
    %v1031 = vpop.f32.mrf.mxu0
    %v1032 = vadd.f32 0.0, %v1031
    %v1033 = vpop.f32.mrf.mxu0
    %v1034 = vadd.f32 0.0, %v1033
    %1035 = vmatmul.bf16.gmra.mxu0 %v1020
    %v1036 = vpop.f32.mrf.mxu0
    %v1037 = vadd.f32 0.0, %v1036
    %v1038 = vpop.f32.mrf.mxu0
    %v1039 = vadd.f32 0.0, %v1038
    %1040 = vdwg.mxu0
    %v1041 = vmul.f32 %v1032, %v205
    %v1042 = vmul.f32 %v1034, %v205
    %v1043 = vmul.f32 %v1037, %v205
    %v1044 = vmul.f32 %v1039, %v205
    %v1045 = vadd.f32 %v1041, %v224
    %v1046 = vadd.f32 %v1042, %v224
    %v1047 = vadd.f32 %v1043, %v224
    %v1048 = vadd.f32 %v1044, %v224
    %v1049 = vmax.f32 %v1045, 0.0
    %v1050 = vmax.f32 %v1046, 0.0
    %v1051 = vmax.f32 %v1047, 0.0
    %v1052 = vmax.f32 %v1048, 0.0
    %s1053 = scalar_lea.vmem %s8, 48
    %v1054 = vld [vmem:[%s1053] sm:$0xf]
    %v1055 = vld [vmem:[%s1053 + $0x4] sm:$0xf]
    %v1056 = vld [vmem:[%s1053 + $0x8] sm:$0xf]
    %v1057 = vld [vmem:[%s1053 + $0xc] sm:$0xf]
    %v1062 = vunpack.c.l.b16 %v1054
    %v1063 = vunpack.c.l.b16 %v1055
    %v1064 = vunpack.c.l.b16 %v1056
    %v1065 = vunpack.c.l.b16 %v1057
    %v1066 = vpack.c.b16 %v1063, %v1062
    %v1067 = vpack.c.b16 %v1065, %v1064
    %1070 = vmatpush.bf16.msra.mxu0 0
    %1071 = vmatpush.bf16.msra.mxu0 0
    %1072 = vmatpush.bf16.msra.mxu0 0
    %1073 = vmatpush.bf16.msra.mxu0 0
    %1074 = vmatpush.bf16.msra.mxu0 0
    %1075 = vmatpush.bf16.msra.mxu0 0
    %1076 = vmatpush.bf16.msra.mxu0 %v1067
    %1077 = vmatpush.bf16.msra.mxu0 %v1066
    %1078 = vmatmul.bf16.gmra.mxu0 %v1017
    %v1079 = vpop.f32.mrf.mxu0
    %v1080 = vadd.f32 0.0, %v1079
    %v1081 = vpop.f32.mrf.mxu0
    %v1082 = vadd.f32 0.0, %v1081
    %1083 = vmatmul.bf16.gmra.mxu0 %v1020
    %v1084 = vpop.f32.mrf.mxu0
    %v1085 = vadd.f32 0.0, %v1084
    %v1086 = vpop.f32.mrf.mxu0
    %v1087 = vadd.f32 0.0, %v1086
    %1088 = vdwg.mxu0
    %v1089 = vadd.f32 %v997, %v1080
    %v1090 = vadd.f32 %v998, %v1082
    %v1091 = vadd.f32 %v999, %v1085
    %v1092 = vadd.f32 %v1000, %v1087
    %v1093 = vpack.c.bf16 %v1050, %v1049
    %v1094 = vpack.c.bf16 %v1052, %v1051
    %s1095 = scalar_lea.vmem %s9, 48
    %v1096 = vld [vmem:[%s1095] sm:$0xf]
    %v1097 = vld [vmem:[%s1095 + $0x4] sm:$0xf]
    %v1098 = vld [vmem:[%s1095 + $0x8] sm:$0xf]
    %v1099 = vld [vmem:[%s1095 + $0xc] sm:$0xf]
    %v1104 = vunpack.c.l.b16 %v1096
    %v1105 = vunpack.c.l.b16 %v1097
    %v1106 = vunpack.c.l.b16 %v1098
    %v1107 = vunpack.c.l.b16 %v1099
    %v1108 = vpack.c.b16 %v1105, %v1104
    %v1109 = vpack.c.b16 %v1107, %v1106
    %v1113 = vsel %vm130, %v1093, 0
    %v1116 = vsel %vm130, %v1094, 0
    %1118 = vmatpush.bf16.msra.mxu0 0
    %1119 = vmatpush.bf16.msra.mxu0 0
    %1120 = vmatpush.bf16.msra.mxu0 0
    %1121 = vmatpush.bf16.msra.mxu0 0
    %1122 = vmatpush.bf16.msra.mxu0 0
    %1123 = vmatpush.bf16.msra.mxu0 0
    %1124 = vmatpush.bf16.msra.mxu0 %v1109
    %1125 = vmatpush.bf16.msra.mxu0 %v1108
    %1126 = vmatmul.bf16.gmra.mxu0 %v1113
    %v1127 = vpop.f32.mrf.mxu0
    %v1128 = vadd.f32 0.0, %v1127
    %v1129 = vpop.f32.mrf.mxu0
    %v1130 = vadd.f32 0.0, %v1129
    %1131 = vmatmul.bf16.gmra.mxu0 %v1116
    %v1132 = vpop.f32.mrf.mxu0
    %v1133 = vadd.f32 0.0, %v1132
    %v1134 = vpop.f32.mrf.mxu0
    %v1135 = vadd.f32 0.0, %v1134
    %1136 = vdwg.mxu0
    %v1137 = vadd.f32 %v1089, %v1128
    %v1138 = vadd.f32 %v1090, %v1130
    %v1139 = vadd.f32 %v1091, %v1133
    %v1140 = vadd.f32 %v1092, %v1135
    %s1141 = scalar_lea.vmem %s3, 64
    %v1142 = vld [vmem:[%s1141] sm:$0xf]
    %v1143 = vld [vmem:[%s1141 + $0x4] sm:$0xf]
    %v1144 = vld [vmem:[%s1141 + $0x8] sm:$0xf]
    %v1145 = vld [vmem:[%s1141 + $0xc] sm:$0xf]
    %v1150 = vunpack.c.l.b16 %v1142
    %v1151 = vunpack.c.l.b16 %v1143
    %v1152 = vunpack.c.l.b16 %v1144
    %v1153 = vunpack.c.l.b16 %v1145
    %v1154 = vpack.c.b16 %v1151, %v1150
    %v1155 = vpack.c.b16 %v1153, %v1152
    %v1157 = vsel %vm130, %v1154, 0
    %v1160 = vsel %vm130, %v1155, 0
    %1162 = vmatpush.bf16.msra.mxu0 0
    %1163 = vmatpush.bf16.msra.mxu0 0
    %1164 = vmatpush.bf16.msra.mxu0 0
    %1165 = vmatpush.bf16.msra.mxu0 0
    %1166 = vmatpush.bf16.msra.mxu0 0
    %1167 = vmatpush.bf16.msra.mxu0 0
    %1168 = vmatpush.bf16.msra.mxu0 %v127
    %1169 = vmatpush.bf16.msra.mxu0 %v126
    %1170 = vmatmul.bf16.gmra.mxu0 %v1157
    %v1171 = vpop.f32.mrf.mxu0
    %v1172 = vadd.f32 0.0, %v1171
    %v1173 = vpop.f32.mrf.mxu0
    %v1174 = vadd.f32 0.0, %v1173
    %1175 = vmatmul.bf16.gmra.mxu0 %v1160
    %v1176 = vpop.f32.mrf.mxu0
    %v1177 = vadd.f32 0.0, %v1176
    %v1178 = vpop.f32.mrf.mxu0
    %v1179 = vadd.f32 0.0, %v1178
    %1180 = vdwg.mxu0
    %v1181 = vmul.f32 %v1172, %v205
    %v1182 = vmul.f32 %v1174, %v205
    %v1183 = vmul.f32 %v1177, %v205
    %v1184 = vmul.f32 %v1179, %v205
    %v1185 = vadd.f32 %v1181, %v224
    %v1186 = vadd.f32 %v1182, %v224
    %v1187 = vadd.f32 %v1183, %v224
    %v1188 = vadd.f32 %v1184, %v224
    %v1189 = vmax.f32 %v1185, 0.0
    %v1190 = vmax.f32 %v1186, 0.0
    %v1191 = vmax.f32 %v1187, 0.0
    %v1192 = vmax.f32 %v1188, 0.0
    %s1193 = scalar_lea.vmem %s8, 64
    %v1194 = vld [vmem:[%s1193] sm:$0xf]
    %v1195 = vld [vmem:[%s1193 + $0x4] sm:$0xf]
    %v1196 = vld [vmem:[%s1193 + $0x8] sm:$0xf]
    %v1197 = vld [vmem:[%s1193 + $0xc] sm:$0xf]
    %v1202 = vunpack.c.l.b16 %v1194
    %v1203 = vunpack.c.l.b16 %v1195
    %v1204 = vunpack.c.l.b16 %v1196
    %v1205 = vunpack.c.l.b16 %v1197
    %v1206 = vpack.c.b16 %v1203, %v1202
    %v1207 = vpack.c.b16 %v1205, %v1204
    %1210 = vmatpush.bf16.msra.mxu0 0
    %1211 = vmatpush.bf16.msra.mxu0 0
    %1212 = vmatpush.bf16.msra.mxu0 0
    %1213 = vmatpush.bf16.msra.mxu0 0
    %1214 = vmatpush.bf16.msra.mxu0 0
    %1215 = vmatpush.bf16.msra.mxu0 0
    %1216 = vmatpush.bf16.msra.mxu0 %v1207
    %1217 = vmatpush.bf16.msra.mxu0 %v1206
    %1218 = vmatmul.bf16.gmra.mxu0 %v1157
    %v1219 = vpop.f32.mrf.mxu0
    %v1220 = vadd.f32 0.0, %v1219
    %v1221 = vpop.f32.mrf.mxu0
    %v1222 = vadd.f32 0.0, %v1221
    %1223 = vmatmul.bf16.gmra.mxu0 %v1160
    %v1224 = vpop.f32.mrf.mxu0
    %v1225 = vadd.f32 0.0, %v1224
    %v1226 = vpop.f32.mrf.mxu0
    %v1227 = vadd.f32 0.0, %v1226
    %1228 = vdwg.mxu0
    %v1229 = vadd.f32 %v1137, %v1220
    %v1230 = vadd.f32 %v1138, %v1222
    %v1231 = vadd.f32 %v1139, %v1225
    %v1232 = vadd.f32 %v1140, %v1227
    %v1233 = vpack.c.bf16 %v1190, %v1189
    %v1234 = vpack.c.bf16 %v1192, %v1191
    %s1235 = scalar_lea.vmem %s9, 64
    %v1236 = vld [vmem:[%s1235] sm:$0xf]
    %v1237 = vld [vmem:[%s1235 + $0x4] sm:$0xf]
    %v1238 = vld [vmem:[%s1235 + $0x8] sm:$0xf]
    %v1239 = vld [vmem:[%s1235 + $0xc] sm:$0xf]
    %v1244 = vunpack.c.l.b16 %v1236
    %v1245 = vunpack.c.l.b16 %v1237
    %v1246 = vunpack.c.l.b16 %v1238
    %v1247 = vunpack.c.l.b16 %v1239
    %v1248 = vpack.c.b16 %v1245, %v1244
    %v1249 = vpack.c.b16 %v1247, %v1246
    %v1253 = vsel %vm130, %v1233, 0
    %v1256 = vsel %vm130, %v1234, 0
    %1258 = vmatpush.bf16.msra.mxu0 0
    %1259 = vmatpush.bf16.msra.mxu0 0
    %1260 = vmatpush.bf16.msra.mxu0 0
    %1261 = vmatpush.bf16.msra.mxu0 0
    %1262 = vmatpush.bf16.msra.mxu0 0
    %1263 = vmatpush.bf16.msra.mxu0 0
    %1264 = vmatpush.bf16.msra.mxu0 %v1249
    %1265 = vmatpush.bf16.msra.mxu0 %v1248
    %1266 = vmatmul.bf16.gmra.mxu0 %v1253
    %v1267 = vpop.f32.mrf.mxu0
    %v1268 = vadd.f32 0.0, %v1267
    %v1269 = vpop.f32.mrf.mxu0
    %v1270 = vadd.f32 0.0, %v1269
    %1271 = vmatmul.bf16.gmra.mxu0 %v1256
    %v1272 = vpop.f32.mrf.mxu0
    %v1273 = vadd.f32 0.0, %v1272
    %v1274 = vpop.f32.mrf.mxu0
    %v1275 = vadd.f32 0.0, %v1274
    %1276 = vdwg.mxu0
    %v1277 = vadd.f32 %v1229, %v1268
    %v1278 = vadd.f32 %v1230, %v1270
    %v1279 = vadd.f32 %v1231, %v1273
    %v1280 = vadd.f32 %v1232, %v1275
    %s1281 = scalar_lea.vmem %s3, 80
    %v1282 = vld [vmem:[%s1281] sm:$0xf]
    %v1283 = vld [vmem:[%s1281 + $0x4] sm:$0xf]
    %v1284 = vld [vmem:[%s1281 + $0x8] sm:$0xf]
    %v1285 = vld [vmem:[%s1281 + $0xc] sm:$0xf]
    %v1290 = vunpack.c.l.b16 %v1282
    %v1291 = vunpack.c.l.b16 %v1283
    %v1292 = vunpack.c.l.b16 %v1284
    %v1293 = vunpack.c.l.b16 %v1285
    %v1294 = vpack.c.b16 %v1291, %v1290
    %v1295 = vpack.c.b16 %v1293, %v1292
    %v1297 = vsel %vm130, %v1294, 0
    %v1300 = vsel %vm130, %v1295, 0
    %1302 = vmatpush.bf16.msra.mxu0 0
    %1303 = vmatpush.bf16.msra.mxu0 0
    %1304 = vmatpush.bf16.msra.mxu0 0
    %1305 = vmatpush.bf16.msra.mxu0 0
    %1306 = vmatpush.bf16.msra.mxu0 0
    %1307 = vmatpush.bf16.msra.mxu0 0
    %1308 = vmatpush.bf16.msra.mxu0 %v127
    %1309 = vmatpush.bf16.msra.mxu0 %v126
    %1310 = vmatmul.bf16.gmra.mxu0 %v1297
    %v1311 = vpop.f32.mrf.mxu0
    %v1312 = vadd.f32 0.0, %v1311
    %v1313 = vpop.f32.mrf.mxu0
    %v1314 = vadd.f32 0.0, %v1313
    %1315 = vmatmul.bf16.gmra.mxu0 %v1300
    %v1316 = vpop.f32.mrf.mxu0
    %v1317 = vadd.f32 0.0, %v1316
    %v1318 = vpop.f32.mrf.mxu0
    %v1319 = vadd.f32 0.0, %v1318
    %1320 = vdwg.mxu0
    %v1321 = vmul.f32 %v1312, %v205
    %v1322 = vmul.f32 %v1314, %v205
    %v1323 = vmul.f32 %v1317, %v205
    %v1324 = vmul.f32 %v1319, %v205
    %v1325 = vadd.f32 %v1321, %v224
    %v1326 = vadd.f32 %v1322, %v224
    %v1327 = vadd.f32 %v1323, %v224
    %v1328 = vadd.f32 %v1324, %v224
    %v1329 = vmax.f32 %v1325, 0.0
    %v1330 = vmax.f32 %v1326, 0.0
    %v1331 = vmax.f32 %v1327, 0.0
    %v1332 = vmax.f32 %v1328, 0.0
    %s1333 = scalar_lea.vmem %s8, 80
    %v1334 = vld [vmem:[%s1333] sm:$0xf]
    %v1335 = vld [vmem:[%s1333 + $0x4] sm:$0xf]
    %v1336 = vld [vmem:[%s1333 + $0x8] sm:$0xf]
    %v1337 = vld [vmem:[%s1333 + $0xc] sm:$0xf]
    %v1342 = vunpack.c.l.b16 %v1334
    %v1343 = vunpack.c.l.b16 %v1335
    %v1344 = vunpack.c.l.b16 %v1336
    %v1345 = vunpack.c.l.b16 %v1337
    %v1346 = vpack.c.b16 %v1343, %v1342
    %v1347 = vpack.c.b16 %v1345, %v1344
    %1350 = vmatpush.bf16.msra.mxu0 0
    %1351 = vmatpush.bf16.msra.mxu0 0
    %1352 = vmatpush.bf16.msra.mxu0 0
    %1353 = vmatpush.bf16.msra.mxu0 0
    %1354 = vmatpush.bf16.msra.mxu0 0
    %1355 = vmatpush.bf16.msra.mxu0 0
    %1356 = vmatpush.bf16.msra.mxu0 %v1347
    %1357 = vmatpush.bf16.msra.mxu0 %v1346
    %1358 = vmatmul.bf16.gmra.mxu0 %v1297
    %v1359 = vpop.f32.mrf.mxu0
    %v1360 = vadd.f32 0.0, %v1359
    %v1361 = vpop.f32.mrf.mxu0
    %v1362 = vadd.f32 0.0, %v1361
    %1363 = vmatmul.bf16.gmra.mxu0 %v1300
    %v1364 = vpop.f32.mrf.mxu0
    %v1365 = vadd.f32 0.0, %v1364
    %v1366 = vpop.f32.mrf.mxu0
    %v1367 = vadd.f32 0.0, %v1366
    %1368 = vdwg.mxu0
    %v1369 = vadd.f32 %v1277, %v1360
    %v1370 = vadd.f32 %v1278, %v1362
    %v1371 = vadd.f32 %v1279, %v1365
    %v1372 = vadd.f32 %v1280, %v1367
    %v1373 = vpack.c.bf16 %v1330, %v1329
    %v1374 = vpack.c.bf16 %v1332, %v1331
    %s1375 = scalar_lea.vmem %s9, 80
    %v1376 = vld [vmem:[%s1375] sm:$0xf]
    %v1377 = vld [vmem:[%s1375 + $0x4] sm:$0xf]
    %v1378 = vld [vmem:[%s1375 + $0x8] sm:$0xf]
    %v1379 = vld [vmem:[%s1375 + $0xc] sm:$0xf]
    %v1384 = vunpack.c.l.b16 %v1376
    %v1385 = vunpack.c.l.b16 %v1377
    %v1386 = vunpack.c.l.b16 %v1378
    %v1387 = vunpack.c.l.b16 %v1379
    %v1388 = vpack.c.b16 %v1385, %v1384
    %v1389 = vpack.c.b16 %v1387, %v1386
    %v1393 = vsel %vm130, %v1373, 0
    %v1396 = vsel %vm130, %v1374, 0
    %1398 = vmatpush.bf16.msra.mxu0 0
    %1399 = vmatpush.bf16.msra.mxu0 0
    %1400 = vmatpush.bf16.msra.mxu0 0
    %1401 = vmatpush.bf16.msra.mxu0 0
    %1402 = vmatpush.bf16.msra.mxu0 0
    %1403 = vmatpush.bf16.msra.mxu0 0
    %1404 = vmatpush.bf16.msra.mxu0 %v1389
    %1405 = vmatpush.bf16.msra.mxu0 %v1388
    %1406 = vmatmul.bf16.gmra.mxu0 %v1393
    %v1407 = vpop.f32.mrf.mxu0
    %v1408 = vadd.f32 0.0, %v1407
    %v1409 = vpop.f32.mrf.mxu0
    %v1410 = vadd.f32 0.0, %v1409
    %1411 = vmatmul.bf16.gmra.mxu0 %v1396
    %v1412 = vpop.f32.mrf.mxu0
    %v1413 = vadd.f32 0.0, %v1412
    %v1414 = vpop.f32.mrf.mxu0
    %v1415 = vadd.f32 0.0, %v1414
    %1416 = vdwg.mxu0
    %v1417 = vadd.f32 %v1369, %v1408
    %v1418 = vadd.f32 %v1370, %v1410
    %v1419 = vadd.f32 %v1371, %v1413
    %v1420 = vadd.f32 %v1372, %v1415
    %s1421 = scalar_lea.vmem %s3, 96
    %v1422 = vld [vmem:[%s1421] sm:$0xf]
    %v1423 = vld [vmem:[%s1421 + $0x4] sm:$0xf]
    %v1424 = vld [vmem:[%s1421 + $0x8] sm:$0xf]
    %v1425 = vld [vmem:[%s1421 + $0xc] sm:$0xf]
    %v1430 = vunpack.c.l.b16 %v1422
    %v1431 = vunpack.c.l.b16 %v1423
    %v1432 = vunpack.c.l.b16 %v1424
    %v1433 = vunpack.c.l.b16 %v1425
    %v1434 = vpack.c.b16 %v1431, %v1430
    %v1435 = vpack.c.b16 %v1433, %v1432
    %v1437 = vsel %vm130, %v1434, 0
    %v1440 = vsel %vm130, %v1435, 0
    %1442 = vmatpush.bf16.msra.mxu0 0
    %1443 = vmatpush.bf16.msra.mxu0 0
    %1444 = vmatpush.bf16.msra.mxu0 0
    %1445 = vmatpush.bf16.msra.mxu0 0
    %1446 = vmatpush.bf16.msra.mxu0 0
    %1447 = vmatpush.bf16.msra.mxu0 0
    %1448 = vmatpush.bf16.msra.mxu0 %v127
    %1449 = vmatpush.bf16.msra.mxu0 %v126
    %1450 = vmatmul.bf16.gmra.mxu0 %v1437
    %v1451 = vpop.f32.mrf.mxu0
    %v1452 = vadd.f32 0.0, %v1451
    %v1453 = vpop.f32.mrf.mxu0
    %v1454 = vadd.f32 0.0, %v1453
    %1455 = vmatmul.bf16.gmra.mxu0 %v1440
    %v1456 = vpop.f32.mrf.mxu0
    %v1457 = vadd.f32 0.0, %v1456
    %v1458 = vpop.f32.mrf.mxu0
    %v1459 = vadd.f32 0.0, %v1458
    %1460 = vdwg.mxu0
    %v1461 = vmul.f32 %v1452, %v205
    %v1462 = vmul.f32 %v1454, %v205
    %v1463 = vmul.f32 %v1457, %v205
    %v1464 = vmul.f32 %v1459, %v205
    %v1465 = vadd.f32 %v1461, %v224
    %v1466 = vadd.f32 %v1462, %v224
    %v1467 = vadd.f32 %v1463, %v224
    %v1468 = vadd.f32 %v1464, %v224
    %v1469 = vmax.f32 %v1465, 0.0
    %v1470 = vmax.f32 %v1466, 0.0
    %v1471 = vmax.f32 %v1467, 0.0
    %v1472 = vmax.f32 %v1468, 0.0
    %s1473 = scalar_lea.vmem %s8, 96
    %v1474 = vld [vmem:[%s1473] sm:$0xf]
    %v1475 = vld [vmem:[%s1473 + $0x4] sm:$0xf]
    %v1476 = vld [vmem:[%s1473 + $0x8] sm:$0xf]
    %v1477 = vld [vmem:[%s1473 + $0xc] sm:$0xf]
    %v1482 = vunpack.c.l.b16 %v1474
    %v1483 = vunpack.c.l.b16 %v1475
    %v1484 = vunpack.c.l.b16 %v1476
    %v1485 = vunpack.c.l.b16 %v1477
    %v1486 = vpack.c.b16 %v1483, %v1482
    %v1487 = vpack.c.b16 %v1485, %v1484
    %1490 = vmatpush.bf16.msra.mxu0 0
    %1491 = vmatpush.bf16.msra.mxu0 0
    %1492 = vmatpush.bf16.msra.mxu0 0
    %1493 = vmatpush.bf16.msra.mxu0 0
    %1494 = vmatpush.bf16.msra.mxu0 0
    %1495 = vmatpush.bf16.msra.mxu0 0
    %1496 = vmatpush.bf16.msra.mxu0 %v1487
    %1497 = vmatpush.bf16.msra.mxu0 %v1486
    %1498 = vmatmul.bf16.gmra.mxu0 %v1437
    %v1499 = vpop.f32.mrf.mxu0
    %v1500 = vadd.f32 0.0, %v1499
    %v1501 = vpop.f32.mrf.mxu0
    %v1502 = vadd.f32 0.0, %v1501
    %1503 = vmatmul.bf16.gmra.mxu0 %v1440
    %v1504 = vpop.f32.mrf.mxu0
    %v1505 = vadd.f32 0.0, %v1504
    %v1506 = vpop.f32.mrf.mxu0
    %v1507 = vadd.f32 0.0, %v1506
    %1508 = vdwg.mxu0
    %v1509 = vadd.f32 %v1417, %v1500
    %v1510 = vadd.f32 %v1418, %v1502
    %v1511 = vadd.f32 %v1419, %v1505
    %v1512 = vadd.f32 %v1420, %v1507
    %v1513 = vpack.c.bf16 %v1470, %v1469
    %v1514 = vpack.c.bf16 %v1472, %v1471
    %s1515 = scalar_lea.vmem %s9, 96
    %v1516 = vld [vmem:[%s1515] sm:$0xf]
    %v1517 = vld [vmem:[%s1515 + $0x4] sm:$0xf]
    %v1518 = vld [vmem:[%s1515 + $0x8] sm:$0xf]
    %v1519 = vld [vmem:[%s1515 + $0xc] sm:$0xf]
    %v1524 = vunpack.c.l.b16 %v1516
    %v1525 = vunpack.c.l.b16 %v1517
    %v1526 = vunpack.c.l.b16 %v1518
    %v1527 = vunpack.c.l.b16 %v1519
    %v1528 = vpack.c.b16 %v1525, %v1524
    %v1529 = vpack.c.b16 %v1527, %v1526
    %v1533 = vsel %vm130, %v1513, 0
    %v1536 = vsel %vm130, %v1514, 0
    %1538 = vmatpush.bf16.msra.mxu0 0
    %1539 = vmatpush.bf16.msra.mxu0 0
    %1540 = vmatpush.bf16.msra.mxu0 0
    %1541 = vmatpush.bf16.msra.mxu0 0
    %1542 = vmatpush.bf16.msra.mxu0 0
    %1543 = vmatpush.bf16.msra.mxu0 0
    %1544 = vmatpush.bf16.msra.mxu0 %v1529
    %1545 = vmatpush.bf16.msra.mxu0 %v1528
    %1546 = vmatmul.bf16.gmra.mxu0 %v1533
    %v1547 = vpop.f32.mrf.mxu0
    %v1548 = vadd.f32 0.0, %v1547
    %v1549 = vpop.f32.mrf.mxu0
    %v1550 = vadd.f32 0.0, %v1549
    %1551 = vmatmul.bf16.gmra.mxu0 %v1536
    %v1552 = vpop.f32.mrf.mxu0
    %v1553 = vadd.f32 0.0, %v1552
    %v1554 = vpop.f32.mrf.mxu0
    %v1555 = vadd.f32 0.0, %v1554
    %1556 = vdwg.mxu0
    %v1557 = vadd.f32 %v1509, %v1548
    %v1558 = vadd.f32 %v1510, %v1550
    %v1559 = vadd.f32 %v1511, %v1553
    %v1560 = vadd.f32 %v1512, %v1555
    %s1561 = scalar_lea.vmem %s3, 112
    %v1562 = vld [vmem:[%s1561] sm:$0xf]
    %v1563 = vld [vmem:[%s1561 + $0x4] sm:$0xf]
    %v1564 = vld [vmem:[%s1561 + $0x8] sm:$0xf]
    %v1565 = vld [vmem:[%s1561 + $0xc] sm:$0xf]
    %v1570 = vunpack.c.l.b16 %v1562
    %v1571 = vunpack.c.l.b16 %v1563
    %v1572 = vunpack.c.l.b16 %v1564
    %v1573 = vunpack.c.l.b16 %v1565
    %v1574 = vpack.c.b16 %v1571, %v1570
    %v1575 = vpack.c.b16 %v1573, %v1572
    %v1577 = vsel %vm130, %v1574, 0
    %v1580 = vsel %vm130, %v1575, 0
    %1582 = vmatpush.bf16.msra.mxu0 0
    %1583 = vmatpush.bf16.msra.mxu0 0
    %1584 = vmatpush.bf16.msra.mxu0 0
    %1585 = vmatpush.bf16.msra.mxu0 0
    %1586 = vmatpush.bf16.msra.mxu0 0
    %1587 = vmatpush.bf16.msra.mxu0 0
    %1588 = vmatpush.bf16.msra.mxu0 %v127
    %1589 = vmatpush.bf16.msra.mxu0 %v126
    %1590 = vmatmul.bf16.gmra.mxu0 %v1577
    %v1591 = vpop.f32.mrf.mxu0
    %v1592 = vadd.f32 0.0, %v1591
    %v1593 = vpop.f32.mrf.mxu0
    %v1594 = vadd.f32 0.0, %v1593
    %1595 = vmatmul.bf16.gmra.mxu0 %v1580
    %v1596 = vpop.f32.mrf.mxu0
    %v1597 = vadd.f32 0.0, %v1596
    %v1598 = vpop.f32.mrf.mxu0
    %v1599 = vadd.f32 0.0, %v1598
    %1600 = vdwg.mxu0
    %v1601 = vmul.f32 %v1592, %v205
    %v1602 = vmul.f32 %v1594, %v205
    %v1603 = vmul.f32 %v1597, %v205
    %v1604 = vmul.f32 %v1599, %v205
    %v1605 = vadd.f32 %v1601, %v224
    %v1606 = vadd.f32 %v1602, %v224
    %v1607 = vadd.f32 %v1603, %v224
    %v1608 = vadd.f32 %v1604, %v224
    %v1609 = vmax.f32 %v1605, 0.0
    %v1610 = vmax.f32 %v1606, 0.0
    %v1611 = vmax.f32 %v1607, 0.0
    %v1612 = vmax.f32 %v1608, 0.0
    %s1613 = scalar_lea.vmem %s8, 112
    %v1614 = vld [vmem:[%s1613] sm:$0xf]
    %v1615 = vld [vmem:[%s1613 + $0x4] sm:$0xf]
    %v1616 = vld [vmem:[%s1613 + $0x8] sm:$0xf]
    %v1617 = vld [vmem:[%s1613 + $0xc] sm:$0xf]
    %v1622 = vunpack.c.l.b16 %v1614
    %v1623 = vunpack.c.l.b16 %v1615
    %v1624 = vunpack.c.l.b16 %v1616
    %v1625 = vunpack.c.l.b16 %v1617
    %v1626 = vpack.c.b16 %v1623, %v1622
    %v1627 = vpack.c.b16 %v1625, %v1624
    %1630 = vmatpush.bf16.msra.mxu0 0
    %1631 = vmatpush.bf16.msra.mxu0 0
    %1632 = vmatpush.bf16.msra.mxu0 0
    %1633 = vmatpush.bf16.msra.mxu0 0
    %1634 = vmatpush.bf16.msra.mxu0 0
    %1635 = vmatpush.bf16.msra.mxu0 0
    %1636 = vmatpush.bf16.msra.mxu0 %v1627
    %1637 = vmatpush.bf16.msra.mxu0 %v1626
    %1638 = vmatmul.bf16.gmra.mxu0 %v1577
    %v1639 = vpop.f32.mrf.mxu0
    %v1640 = vadd.f32 0.0, %v1639
    %v1641 = vpop.f32.mrf.mxu0
    %v1642 = vadd.f32 0.0, %v1641
    %1643 = vmatmul.bf16.gmra.mxu0 %v1580
    %v1644 = vpop.f32.mrf.mxu0
    %v1645 = vadd.f32 0.0, %v1644
    %v1646 = vpop.f32.mrf.mxu0
    %v1647 = vadd.f32 0.0, %v1646
    %1648 = vdwg.mxu0
    %v1649 = vadd.f32 %v1557, %v1640
    %v1650 = vadd.f32 %v1558, %v1642
    %v1651 = vadd.f32 %v1559, %v1645
    %v1652 = vadd.f32 %v1560, %v1647
    %v1653 = vpack.c.bf16 %v1610, %v1609
    %v1654 = vpack.c.bf16 %v1612, %v1611
    %s1655 = scalar_lea.vmem %s9, 112
    %v1656 = vld [vmem:[%s1655] sm:$0xf]
    %v1657 = vld [vmem:[%s1655 + $0x4] sm:$0xf]
    %v1658 = vld [vmem:[%s1655 + $0x8] sm:$0xf]
    %v1659 = vld [vmem:[%s1655 + $0xc] sm:$0xf]
    %v1664 = vunpack.c.l.b16 %v1656
    %v1665 = vunpack.c.l.b16 %v1657
    %v1666 = vunpack.c.l.b16 %v1658
    %v1667 = vunpack.c.l.b16 %v1659
    %v1668 = vpack.c.b16 %v1665, %v1664
    %v1669 = vpack.c.b16 %v1667, %v1666
    %v1673 = vsel %vm130, %v1653, 0
    %v1676 = vsel %vm130, %v1654, 0
    %1678 = vmatpush.bf16.msra.mxu0 0
    %1679 = vmatpush.bf16.msra.mxu0 0
    %1680 = vmatpush.bf16.msra.mxu0 0
    %1681 = vmatpush.bf16.msra.mxu0 0
    %1682 = vmatpush.bf16.msra.mxu0 0
    %1683 = vmatpush.bf16.msra.mxu0 0
    %1684 = vmatpush.bf16.msra.mxu0 %v1669
    %1685 = vmatpush.bf16.msra.mxu0 %v1668
    %1686 = vmatmul.bf16.gmra.mxu0 %v1673
    %v1687 = vpop.f32.mrf.mxu0
    %v1688 = vadd.f32 0.0, %v1687
    %v1689 = vpop.f32.mrf.mxu0
    %v1690 = vadd.f32 0.0, %v1689
    %1691 = vmatmul.bf16.gmra.mxu0 %v1676
    %v1692 = vpop.f32.mrf.mxu0
    %v1693 = vadd.f32 0.0, %v1692
    %v1694 = vpop.f32.mrf.mxu0
    %v1695 = vadd.f32 0.0, %v1694
    %1696 = vdwg.mxu0
    %v1697 = vadd.f32 %v1649, %v1688
    %v1698 = vadd.f32 %v1650, %v1690
    %v1699 = vadd.f32 %v1651, %v1693
    %v1700 = vadd.f32 %v1652, %v1695
    %s1701 = scalar_lea.vmem %s3, 128
    %v1702 = vld [vmem:[%s1701] sm:$0xf]
    %v1703 = vld [vmem:[%s1701 + $0x4] sm:$0xf]
    %v1704 = vld [vmem:[%s1701 + $0x8] sm:$0xf]
    %v1705 = vld [vmem:[%s1701 + $0xc] sm:$0xf]
    %v1710 = vunpack.c.l.b16 %v1702
    %v1711 = vunpack.c.l.b16 %v1703
    %v1712 = vunpack.c.l.b16 %v1704
    %v1713 = vunpack.c.l.b16 %v1705
    %v1714 = vpack.c.b16 %v1711, %v1710
    %v1715 = vpack.c.b16 %v1713, %v1712
    %v1717 = vsel %vm130, %v1714, 0
    %v1720 = vsel %vm130, %v1715, 0
    %1722 = vmatpush.bf16.msra.mxu0 0
    %1723 = vmatpush.bf16.msra.mxu0 0
    %1724 = vmatpush.bf16.msra.mxu0 0
    %1725 = vmatpush.bf16.msra.mxu0 0
    %1726 = vmatpush.bf16.msra.mxu0 0
    %1727 = vmatpush.bf16.msra.mxu0 0
    %1728 = vmatpush.bf16.msra.mxu0 %v127
    %1729 = vmatpush.bf16.msra.mxu0 %v126
    %1730 = vmatmul.bf16.gmra.mxu0 %v1717
    %v1731 = vpop.f32.mrf.mxu0
    %v1732 = vadd.f32 0.0, %v1731
    %v1733 = vpop.f32.mrf.mxu0
    %v1734 = vadd.f32 0.0, %v1733
    %1735 = vmatmul.bf16.gmra.mxu0 %v1720
    %v1736 = vpop.f32.mrf.mxu0
    %v1737 = vadd.f32 0.0, %v1736
    %v1738 = vpop.f32.mrf.mxu0
    %v1739 = vadd.f32 0.0, %v1738
    %1740 = vdwg.mxu0
    %v1741 = vmul.f32 %v1732, %v205
    %v1742 = vmul.f32 %v1734, %v205
    %v1743 = vmul.f32 %v1737, %v205
    %v1744 = vmul.f32 %v1739, %v205
    %v1745 = vadd.f32 %v1741, %v224
    %v1746 = vadd.f32 %v1742, %v224
    %v1747 = vadd.f32 %v1743, %v224
    %v1748 = vadd.f32 %v1744, %v224
    %v1749 = vmax.f32 %v1745, 0.0
    %v1750 = vmax.f32 %v1746, 0.0
    %v1751 = vmax.f32 %v1747, 0.0
    %v1752 = vmax.f32 %v1748, 0.0
    %s1753 = scalar_lea.vmem %s8, 128
    %v1754 = vld [vmem:[%s1753] sm:$0xf]
    %v1755 = vld [vmem:[%s1753 + $0x4] sm:$0xf]
    %v1756 = vld [vmem:[%s1753 + $0x8] sm:$0xf]
    %v1757 = vld [vmem:[%s1753 + $0xc] sm:$0xf]
    %v1762 = vunpack.c.l.b16 %v1754
    %v1763 = vunpack.c.l.b16 %v1755
    %v1764 = vunpack.c.l.b16 %v1756
    %v1765 = vunpack.c.l.b16 %v1757
    %v1766 = vpack.c.b16 %v1763, %v1762
    %v1767 = vpack.c.b16 %v1765, %v1764
    %1770 = vmatpush.bf16.msra.mxu0 0
    %1771 = vmatpush.bf16.msra.mxu0 0
    %1772 = vmatpush.bf16.msra.mxu0 0
    %1773 = vmatpush.bf16.msra.mxu0 0
    %1774 = vmatpush.bf16.msra.mxu0 0
    %1775 = vmatpush.bf16.msra.mxu0 0
    %1776 = vmatpush.bf16.msra.mxu0 %v1767
    %1777 = vmatpush.bf16.msra.mxu0 %v1766
    %1778 = vmatmul.bf16.gmra.mxu0 %v1717
    %v1779 = vpop.f32.mrf.mxu0
    %v1780 = vadd.f32 0.0, %v1779
    %v1781 = vpop.f32.mrf.mxu0
    %v1782 = vadd.f32 0.0, %v1781
    %1783 = vmatmul.bf16.gmra.mxu0 %v1720
    %v1784 = vpop.f32.mrf.mxu0
    %v1785 = vadd.f32 0.0, %v1784
    %v1786 = vpop.f32.mrf.mxu0
    %v1787 = vadd.f32 0.0, %v1786
    %1788 = vdwg.mxu0
    %v1789 = vadd.f32 %v1697, %v1780
    %v1790 = vadd.f32 %v1698, %v1782
    %v1791 = vadd.f32 %v1699, %v1785
    %v1792 = vadd.f32 %v1700, %v1787
    %v1793 = vpack.c.bf16 %v1750, %v1749
    %v1794 = vpack.c.bf16 %v1752, %v1751
    %s1795 = scalar_lea.vmem %s9, 128
    %v1796 = vld [vmem:[%s1795] sm:$0xf]
    %v1797 = vld [vmem:[%s1795 + $0x4] sm:$0xf]
    %v1798 = vld [vmem:[%s1795 + $0x8] sm:$0xf]
    %v1799 = vld [vmem:[%s1795 + $0xc] sm:$0xf]
    %v1804 = vunpack.c.l.b16 %v1796
    %v1805 = vunpack.c.l.b16 %v1797
    %v1806 = vunpack.c.l.b16 %v1798
    %v1807 = vunpack.c.l.b16 %v1799
    %v1808 = vpack.c.b16 %v1805, %v1804
    %v1809 = vpack.c.b16 %v1807, %v1806
    %v1813 = vsel %vm130, %v1793, 0
    %v1816 = vsel %vm130, %v1794, 0
    %1818 = vmatpush.bf16.msra.mxu0 0
    %1819 = vmatpush.bf16.msra.mxu0 0
    %1820 = vmatpush.bf16.msra.mxu0 0
    %1821 = vmatpush.bf16.msra.mxu0 0
    %1822 = vmatpush.bf16.msra.mxu0 0
    %1823 = vmatpush.bf16.msra.mxu0 0
    %1824 = vmatpush.bf16.msra.mxu0 %v1809
    %1825 = vmatpush.bf16.msra.mxu0 %v1808
    %1826 = vmatmul.bf16.gmra.mxu0 %v1813
    %v1827 = vpop.f32.mrf.mxu0
    %v1828 = vadd.f32 0.0, %v1827
    %v1829 = vpop.f32.mrf.mxu0
    %v1830 = vadd.f32 0.0, %v1829
    %1831 = vmatmul.bf16.gmra.mxu0 %v1816
    %v1832 = vpop.f32.mrf.mxu0
    %v1833 = vadd.f32 0.0, %v1832
    %v1834 = vpop.f32.mrf.mxu0
    %v1835 = vadd.f32 0.0, %v1834
    %1836 = vdwg.mxu0
    %v1837 = vadd.f32 %v1789, %v1828
    %v1838 = vadd.f32 %v1790, %v1830
    %v1839 = vadd.f32 %v1791, %v1833
    %v1840 = vadd.f32 %v1792, %v1835
    %v1842 = vperm.slane %v590, 0
    %v1844 = vmul.f32 %v1837, %v1842
    %v1845 = vmul.f32 %v1838, %v1842
    %v1846 = vmul.f32 %v1839, %v1842
    %v1847 = vmul.f32 %v1840, %v1842
    %v1849 = vperm.slane %v591, 0
    %v1851 = vadd.f32 %v1844, %v1849
    %v1852 = vadd.f32 %v1845, %v1849
    %v1853 = vadd.f32 %v1846, %v1849
    %v1854 = vadd.f32 %v1847, %v1849
    %v1855 = vmax.f32 %v1851, 0.0
    %v1856 = vmax.f32 %v1852, 0.0
    %v1857 = vmax.f32 %v1853, 0.0
    %v1858 = vmax.f32 %v1854, 0.0
    %v1859 = vld [vmem:[%s4] sm:$0xff]
    %v1860 = vld [vmem:[%s4 + $0x8] sm:$0xff]
    %v1861 = vld [vmem:[%s4 + $0x10] sm:$0xff]
    %v1862 = vld [vmem:[%s4 + $0x18] sm:$0xff]
    %1864 = vset.pattern.permute.xlu0 0
    %1865 = vperm.xlu0 %1864, %v1859
    %v1866 = vpop.permute.xlu0 %1865
    %1869 = vset.pattern.permute.xlu0 0
    %1870 = vperm.xlu0 %1869, %v1860
    %v1871 = vpop.permute.xlu0 %1870
    %1874 = vset.pattern.permute.xlu0 0
    %1875 = vperm.xlu0 %1874, %v1861
    %v1876 = vpop.permute.xlu0 %1875
    %1879 = vset.pattern.permute.xlu0 0
    %1880 = vperm.xlu0 %1879, %v1862
    %v1881 = vpop.permute.xlu0 %1880
    %v1883 = vmul.f32 %v1855, %v1866
    %v1884 = vmul.f32 %v1856, %v1871
    %v1885 = vmul.f32 %v1857, %v1876
    %v1886 = vmul.f32 %v1858, %v1881
    %v1887 = vsel %vm130, %v1883, 0.0
    %v1888 = vsel %vm130, %v1884, 0.0
    %v1889 = vadd.f32 %v1887, %v1888
    %v1890 = vrot.slane %v1889, 4
    %v1891 = vadd.f32 %v1889, %v1890
    %v1892 = vrot.slane %v1891, 2
    %v1893 = vadd.f32 %v1891, %v1892
    %v1894 = vrot.slane %v1893, 1
    %v1895 = vadd.f32 %v1893, %v1894
    %v1896 = vsel %vm130, %v1885, 0.0
    %v1897 = vsel %vm130, %v1886, 0.0
    %v1898 = vadd.f32 %v1896, %v1897
    %v1899 = vrot.slane %v1898, 4
    %v1900 = vadd.f32 %v1898, %v1899
    %v1901 = vrot.slane %v1900, 2
    %v1902 = vadd.f32 %v1900, %v1901
    %v1903 = vrot.slane %v1902, 1
    %v1904 = vadd.f32 %v1902, %v1903
    %v1905 = vmul.f32 %v1895, 0.11111111
    %v1906 = vmul.f32 %v1904, 0.11111111
    %v1907 = vld [vmem:[%s12] sm:$0xf]
    %v1908 = vld [vmem:[%s12 + $0x4] sm:$0xf]
    %v1909 = vld [vmem:[%s12 + $0x8] sm:$0xf]
    %v1910 = vld [vmem:[%s12 + $0xc] sm:$0xf]
    %v1911 = vld [vmem:[%s2] sm:$0x3]
    %v1912 = vpack.c.bf16 %v588, %v588
    %v1913 = vpack.c.bf16 %v589, %v589
    %v1916 = vunpack.c.l.b16 %v1912
    %v1917 = vunpack.c.l.b16 %v1913
    %v1918 = vsel %vm530, %v1917, %v1916
    %v1919 = vpack.c.b16 %v1918, %v1918
    %v1924 = vunpack.c.l.b16 %v1907
    %v1925 = vunpack.c.l.b16 %v1908
    %v1926 = vunpack.c.l.b16 %v1909
    %v1927 = vunpack.c.l.b16 %v1910
    %v1928 = vpack.c.b16 %v1925, %v1924
    %v1929 = vpack.c.b16 %v1927, %v1926
    %v1933 = vsel %vm130, %v1919, 0
    %1935 = vmatpush.bf16.msra.mxu0 0
    %1936 = vmatpush.bf16.msra.mxu0 0
    %1937 = vmatpush.bf16.msra.mxu0 0
    %1938 = vmatpush.bf16.msra.mxu0 0
    %1939 = vmatpush.bf16.msra.mxu0 0
    %1940 = vmatpush.bf16.msra.mxu0 0
    %1941 = vmatpush.bf16.msra.mxu0 %v1929
    %1942 = vmatpush.bf16.msra.mxu0 %v1928
    %1943 = vmatmul.bf16.gmra.mxu0 %v1933
    %v1944 = vpop.f32.mrf.mxu0
    %v1945 = vadd.f32 0.0, %v1944
    %v1946 = vpop.f32.mrf.mxu0
    %1947 = vdwg.mxu0
    %1948 = vst [vmem:[%s15] sm:$0x3] %v1945
    %v1949 = vpack.c.bf16 %v1911, %v1911
    %v1951 = vsel %vm130, %v1949, 0
    %1953 = vmatpush.bf16.msra.mxu0 0
    %1954 = vmatpush.bf16.msra.mxu0 0
    %1955 = vmatpush.bf16.msra.mxu0 0
    %1956 = vmatpush.bf16.msra.mxu0 0
    %1957 = vmatpush.bf16.msra.mxu0 0
    %1958 = vmatpush.bf16.msra.mxu0 0
    %1959 = vmatpush.bf16.msra.mxu0 %v1929
    %1960 = vmatpush.bf16.msra.mxu0 %v1928
    %1961 = vmatmul.bf16.gmra.mxu0 %v1951
    %v1962 = vpop.f32.mrf.mxu0
    %v1963 = vadd.f32 0.0, %v1962
    %v1964 = vpop.f32.mrf.mxu0
    %1965 = vdwg.mxu0
    %1966 = vst [vmem:[%s16] sm:$0x3] %v1963
    %v1967 = vpack.c.bf16 %v1905, %v1905
    %v1968 = vpack.c.bf16 %v1906, %v1906
    %v1971 = vunpack.c.l.b16 %v1967
    %v1972 = vunpack.c.l.b16 %v1968
    %v1973 = vsel %vm530, %v1972, %v1971
    %v1974 = vpack.c.b16 %v1973, %v1973
    %v1976 = vsel %vm130, %v1974, 0
    %1978 = vmatpush.bf16.msra.mxu0 0
    %1979 = vmatpush.bf16.msra.mxu0 0
    %1980 = vmatpush.bf16.msra.mxu0 0
    %1981 = vmatpush.bf16.msra.mxu0 0
    %1982 = vmatpush.bf16.msra.mxu0 0
    %1983 = vmatpush.bf16.msra.mxu0 0
    %1984 = vmatpush.bf16.msra.mxu0 %v1929
    %1985 = vmatpush.bf16.msra.mxu0 %v1928
    %1986 = vmatmul.bf16.gmra.mxu0 %v1976
    %v1987 = vpop.f32.mrf.mxu0
    %v1988 = vadd.f32 0.0, %v1987
    %v1989 = vpop.f32.mrf.mxu0
    %1990 = vdwg.mxu0
    %1991 = vst [vmem:[%s17] sm:$0x3] %v1988
    %1992 = vmatpush.bf16.xpose.msra.mxu0 0
    %1993 = vmatpush.bf16.xpose.msra.mxu0 0
    %1994 = vmatpush.bf16.xpose.msra.mxu0 0
    %1995 = vmatpush.bf16.xpose.msra.mxu0 0
    %1996 = vmatpush.bf16.xpose.msra.mxu0 0
    %1997 = vmatpush.bf16.xpose.msra.mxu0 0
    %1998 = vmatpush.bf16.xpose.msra.mxu0 0
    %1999 = vmatpush.bf16.xpose.msra.mxu0 %v1933
    %2000 = vmatmul.bf16.gmra.mxu0 %v1933
    %v2001 = vpop.f32.mrf.mxu0
    %v2002 = vadd.f32 0.0, %v2001
    %v2003 = vpop.f32.mrf.mxu0
    %2004 = vdwg.mxu0
    %v2005 = vmul.f32 %v2002, %v2002
    %vm2006 = vcmask 9216
    %v2007 = vsel %vm2006, %v2005, 0.0
    %2008 = vadd.xlane.f32.xlu0 %v2007
    %v2009 = vpop.xlane.xlu0 %2008
    %v2010 = vmax.f32 %v2009, 1e-24
    %v2011 = vrsqrt.pop %v2010
    %v2012 = vmul.f32 %v2011, %v2010
    %v2013 = vmul.f32 %v2012, %v2011
    %v2014 = vmul.f32 0.5, %v2013
    %v2015 = vsub.f32 1.5, %v2014
    %v2016 = vmul.f32 %v2011, %v2015
    %vm2017 = vweird.f32 %v2010
    %vm2018 = vweird.f32 %v2011
    %vm2019 = vmor %vm2017, %vm2018
    %v2020 = vsel %vm2019, %v2011, %v2016
    %v2021 = vmul.f32 %v2002, %v2020
    %2022 = vst.msk [vmem:[#allocation2] sm:$0x3] %vm2006, %v2021
    %2023 = vmatpush.bf16.xpose.msra.mxu0 0
    %2024 = vmatpush.bf16.xpose.msra.mxu0 0
    %2025 = vmatpush.bf16.xpose.msra.mxu0 0
    %2026 = vmatpush.bf16.xpose.msra.mxu0 0
    %2027 = vmatpush.bf16.xpose.msra.mxu0 0
    %2028 = vmatpush.bf16.xpose.msra.mxu0 0
    %2029 = vmatpush.bf16.xpose.msra.mxu0 0
    %2030 = vmatpush.bf16.xpose.msra.mxu0 %v1951
    %2031 = vmatmul.bf16.gmra.mxu0 %v1951
    %v2032 = vpop.f32.mrf.mxu0
    %v2033 = vadd.f32 0.0, %v2032
    %v2034 = vpop.f32.mrf.mxu0
    %2035 = vdwg.mxu0
    %v2036 = vmul.f32 %v2033, %v2033
    %v2037 = vsel %vm2006, %v2036, 0.0
    %2038 = vadd.xlane.f32.xlu0 %v2037
    %v2039 = vpop.xlane.xlu0 %2038
    %v2040 = vmax.f32 %v2039, 1e-24
    %v2041 = vrsqrt.pop %v2040
    %v2042 = vmul.f32 %v2041, %v2040
    %v2043 = vmul.f32 %v2042, %v2041
    %v2044 = vmul.f32 0.5, %v2043
    %v2045 = vsub.f32 1.5, %v2044
    %v2046 = vmul.f32 %v2041, %v2045
    %vm2047 = vweird.f32 %v2040
    %vm2048 = vweird.f32 %v2041
    %vm2049 = vmor %vm2047, %vm2048
    %v2050 = vsel %vm2049, %v2041, %v2046
    %v2051 = vmul.f32 %v2033, %v2050
    %2052 = vst.msk [vmem:[#allocation4] sm:$0x3] %vm2006, %v2051
    // Predicated region
    $region58: #{facial_forward_train.1} parent=1 // pred_check
      _
    $region59: #{facial_forward_train.1} parent=1 // pred_check_branch
      %2054 = sbr.rel (0) target = $region61
    $region60: #{facial_forward_train.1} parent=1 // pred_region
      _
    $region61: #{facial_forward_train.1} parent=1 // pred_fallthru
      _
    // Predicated region
    $region62: #{facial_forward_train.1} parent=1 // pred_check
      _
    $region63: #{facial_forward_train.1} parent=1 // pred_check_branch
      %2056 = sbr.rel (0) target = $region65
    $region64: #{facial_forward_train.1} parent=1 // pred_region
      _
    $region65: #{facial_forward_train.1} parent=1 // pred_fallthru
      _
    // Predicated region
    $region66: #{facial_forward_train.1} parent=1 // pred_check
      _
    $region67: #{facial_forward_train.1} parent=1 // pred_check_branch
      %2058 = sbr.rel (0) target = $region69
    $region68: #{facial_forward_train.1} parent=1 // pred_region
      _
    $region69: #{facial_forward_train.1} parent=1 // pred_fallthru
      _
    // Predicated region
    $region70: #{facial_forward_train.1} parent=1 // pred_check
      _
    $region71: #{facial_forward_train.1} parent=1 // pred_check_branch
      %2060 = sbr.rel (0) target = $region73
    $region72: #{facial_forward_train.1} parent=1 // pred_region
      _
    $region73: #{facial_forward_train.1} parent=1 // pred_fallthru
      _
    // Predicated region
    $region74: #{facial_forward_train.1} parent=1 // pred_check
      _
    $region75: #{facial_forward_train.1} parent=1 // pred_check_branch
      %2062 = sbr.rel (0) target = $region77
    $region76: #{facial_forward_train.1} parent=1 // pred_region
      %2064 = vsyncadd [#allocation3], 0
      %s2066 = sshll.u32 [#allocation2], 4
      %s2067 = int_to_ptr.vmem [resolvable:$true] %s2066
      %s2068 = sshll.u32 %s18, 4
      %s2069 = int_to_ptr.hbm [resolvable:$true] %s2068
      %2071 = dma.vmem_to_hbm [thread:$0]  %s2067, 32, %s2069, [#allocation3]
    $region77: #{facial_forward_train.1} parent=1 // pred_fallthru
      _
    // Predicated region
    $region78: #{facial_forward_train.1} parent=1 // pred_check
      _
    $region79: #{facial_forward_train.1} parent=1 // pred_check_branch
      %2073 = sbr.rel (0) target = $region81
    $region80: #{facial_forward_train.1} parent=1 // pred_region
      %2075 = vsyncadd [#allocation5], 0
      %s2077 = sshll.u32 [#allocation4], 4
      %s2078 = int_to_ptr.vmem [resolvable:$true] %s2077
      %s2079 = sshll.u32 %s19, 4
      %s2080 = int_to_ptr.hbm [resolvable:$true] %s2079
      %2082 = dma.vmem_to_hbm [thread:$0]  %s2078, 32, %s2080, [#allocation5]
    $region81: #{facial_forward_train.1} parent=1 // pred_fallthru
      _
    // Predicated region
    $region82: #{facial_forward_train.1} parent=1 // pred_check
      _
    $region83: #{facial_forward_train.1} parent=1 // pred_check_branch
      %2084 = sbr.rel (0) target = $region85
    $region84: #{facial_forward_train.1} parent=1 // pred_region
      _
    $region85: #{facial_forward_train.1} parent=1 // pred_fallthru
      _
    // Predicated region
    $region86: #{facial_forward_train.1} parent=1 // pred_check
      _
    $region87: #{facial_forward_train.1} parent=1 // pred_check_branch
      %2086 = sbr.rel (0) target = $region89
    $region88: #{facial_forward_train.1} parent=1 // pred_region
      _
    $region89: #{facial_forward_train.1} parent=1 // pred_fallthru
      _
    // Predicated region
    $region90: #{facial_forward_train.1} parent=1 // pred_check
      _
    $region91: #{facial_forward_train.1} parent=1 // pred_check_branch
      %2088 = sbr.rel (0) target = $region93
    $region92: #{facial_forward_train.1} parent=1 // pred_region
      _
    $region93: #{facial_forward_train.1} parent=1 // pred_fallthru
      _
    // Predicated region
    $region94: #{facial_forward_train.1} parent=1 // pred_check
      _
    $region95: #{facial_forward_train.1} parent=1 // pred_check_branch
      %2090 = sbr.rel (0) target = $region97
    $region96: #{facial_forward_train.1} parent=1 // pred_region
      _
    $region97: #{facial_forward_train.1} parent=1 // pred_fallthru
      _
    // Predicated region
    $region98: #{facial_forward_train.1} parent=1 // pred_check
      _
    $region99: #{facial_forward_train.1} parent=1 // pred_check_branch
      %2092 = sbr.rel (0) target = $region101
    $region100: #{facial_forward_train.1} parent=1 // pred_region
      %2094 = dma.done [#allocation3], 32
    $region101: #{facial_forward_train.1} parent=1 // pred_fallthru
      _
    // Predicated region
    $region102: #{facial_forward_train.1} parent=1 // pred_check
      _
    $region103: #{facial_forward_train.1} parent=1 // pred_check_branch
      %2096 = sbr.rel (0) target = $region105
    $region104: #{facial_forward_train.1} parent=1 // pred_region
      %2098 = dma.done [#allocation5], 32
    $region105: #{facial_forward_train.1} parent=1 // pred_fallthru
      _
    %2099 = vsyncpa [#allocation3], 1
    %2100 = vsyncpa [#allocation5], 1

</llo_original>
